<compile_context>
chip_gen: v7x
topology: tpu7x:2x2x1
jax: 0.10.0
libtpu: 0.0.40
codegen_flags: <defaults>
</compile_context>

<pallas_src>
import functools

import jax
import jax.numpy as jnp
from jax.experimental import pallas as pl
from jax.experimental.pallas import tpu as pltpu

# Layer dims, stored as (in, out) = W^T so the kernel computes y = x @ W + b.
# Only output widths (and the inputs of layers 2..4, which consume the
# zero-padded activations) are padded to lane multiples; layer-1 keeps K=784.
_ORIG_DIMS = [(784, 400), (400, 200), (200, 100), (100, 10)]
_PAD_DIMS = [(784, 512), (512, 256), (256, 128), (128, 128)]
_D_IN, _D_OUT = 784, 10
_D_OUT_PAD = 128


def _mlp_kernel(x_ref,
                w1_ref, b1_ref,
                w2_ref, b2_ref,
                w3_ref, b3_ref,
                w4_ref, b4_ref,
                out_ref):
    """Fused 4-layer MLP on one batch tile; all weights resident in VMEM."""
    mm = w1_ref.dtype  # bf16 matmul operands, f32 accumulation.

    h = jnp.dot(x_ref[...].astype(mm), w1_ref[...],
                preferred_element_type=jnp.float32) + b1_ref[...]
    h = jnp.maximum(h, 0.0)

    h = jnp.dot(h.astype(mm), w2_ref[...],
                preferred_element_type=jnp.float32) + b2_ref[...]
    h = jnp.maximum(h, 0.0)

    h = jnp.dot(h.astype(mm), w3_ref[...],
                preferred_element_type=jnp.float32) + b3_ref[...]
    h = jnp.maximum(h, 0.0)

    h = jnp.dot(h.astype(mm), w4_ref[...],
                preferred_element_type=jnp.float32) + b4_ref[...]

    out_ref[...] = h.astype(out_ref.dtype)


def _cdiv(a, b):
    return -(-a // b)


def _round_up(v, m):
    return ((v + m - 1) // m) * m


def prepare_params(params, use_bf16=True):
    """One-time pad+cast of weights/biases to the kernel's lane-aligned layout.

    Hoisted out of the per-call path so the jitted forward never re-reads the
    raw f32 weights.  Zero weight rows/cols plus ReLU(0)=0 keep padded lanes at
    exactly 0, so the math is unchanged.
    """
    mm = jnp.bfloat16 if use_bf16 else jnp.float32
    prepared = {}
    for n, ((di, do), (pi, po)) in enumerate(zip(_ORIG_DIMS, _PAD_DIMS), 1):
        prepared[f"w{n}"] = jnp.pad(
            params[f"w{n}"], ((0, pi - di), (0, po - do))).astype(mm)
        prepared[f"b{n}"] = jnp.pad(
            params[f"b{n}"], ((0, 0), (0, po - do))).astype(jnp.float32)
    return prepared


@functools.partial(jax.jit, static_argnames=("block_b", "prefer_multicore"))
def bpnn_forward(x, prepared, *, block_b=512, prefer_multicore=False):
    """x: (B, 784) float32.  prepared: output of prepare_params()."""
    B, d_in = x.shape
    assert d_in == _D_IN

    # Balanced batch tiling: pick the number of grid steps first, then the
    # smallest 16-row-aligned tile covering B (waste < 16 rows per tile).
    nt = _cdiv(B, block_b)
    if prefer_multicore and B > 128:
        nt = max(nt, 2)        # >=2 steps so both v7x TensorCores get work
        nt += nt % 2           # even step count -> balanced TC split
    eff_block = _round_up(_cdiv(B, nt), 16)
    b_pad = nt * eff_block

    # Only pad rows (cheap, often a no-op); x stays f32 and un-padded in K.
    x_in = x if b_pad == B else jnp.pad(x, ((0, b_pad - B), (0, 0)))

    def resident_spec(arr):
        # Constant block index -> the weight/bias block stays VMEM-resident;
        # Pallas does not re-DMA a block whose index is unchanged across steps.
        return pl.BlockSpec(arr.shape, lambda i: (0, 0))

    ws = [prepared[f"w{n}"] for n in range(1, 5)]
    bs = [prepared[f"b{n}"] for n in range(1, 5)]

    out = pl.pallas_call(
        _mlp_kernel,
        out_shape=jax.ShapeDtypeStruct((b_pad, _D_OUT_PAD), jnp.bfloat16),
        grid_spec=pltpu.PrefetchScalarGridSpec(
            num_scalar_prefetch=0,
            grid=(nt,),
            in_specs=[
                pl.BlockSpec((eff_block, _D_IN), lambda i: (i, 0)),
                resident_spec(ws[0]), resident_spec(bs[0]),
                resident_spec(ws[1]), resident_spec(bs[1]),
                resident_spec(ws[2]), resident_spec(bs[2]),
                resident_spec(ws[3]), resident_spec(bs[3]),
            ],
            out_specs=pl.BlockSpec((eff_block, _D_OUT_PAD), lambda i: (i, 0)),
        ),
        compiler_params=pltpu.CompilerParams(
            # Batch axis is embarrassingly parallel -> megacore sharding.
            dimension_semantics=("parallel",),
            # Actual footprint is ~10-16 MiB even at block_b=1024; keep the
            # request well under v7x's 64 MiB physical VMEM.
            vmem_limit_bytes=32 * 1024 * 1024,
        ),
    )(x_in, ws[0], bs[0], ws[1], bs[1], ws[2], bs[2], ws[3], bs[3])

    return out[:B, :_D_OUT].astype(jnp.float32)


def _default_config():
    """Pick batch tile / megacore policy from the attached TPU generation."""
    try:
        kind = jax.devices()[0].device_kind.lower()
    except Exception:
        kind = ""
    is_v7 = "v7" in kind
    # v6e has 128 MiB VMEM -> bigger tile halves per-step overhead; keep 512
    # on v7x (64 MiB / 2 TCs) so both cores still get >=2 steps each.
    block_b = 1024 if ("v6" in kind and not is_v7) else 512
    return block_b, is_v7


def init_params(key):
    """Deterministic init mimicking PyTorch nn.Linear default:
    U(-1/sqrt(fan_in), 1/sqrt(fan_in)) for weight and bias.
    Weights stored as (in, out) = W^T so the kernel does x @ W."""
    params = {}
    keys = jax.random.split(key, 2 * len(_ORIG_DIMS))
    for n, (d_in, d_out) in enumerate(_ORIG_DIMS):
        bound = 1.0 / jnp.sqrt(jnp.float32(d_in))
        params[f"w{n + 1}"] = jax.random.uniform(
            keys[2 * n], (d_in, d_out), minval=-bound, maxval=bound,
            dtype=jnp.float32)
        params[f"b{n + 1}"] = jax.random.uniform(
            keys[2 * n + 1], (1, d_out), minval=-bound, maxval=bound,
            dtype=jnp.float32)
    return params


def reference_forward(x, params, use_bf16=True):
    """Pure-JAX reference with the same matmul-operand dtype as the kernel."""
    mm = jnp.bfloat16 if use_bf16 else jnp.float32

    def lin(a, w, b):
        return jnp.dot(a.astype(mm), w.astype(mm),
                       preferred_element_type=jnp.float32) + b

    h = jnp.maximum(lin(x, params["w1"], params["b1"]), 0.0)
    h = jnp.maximum(lin(h, params["w2"], params["b2"]), 0.0)
    h = jnp.maximum(lin(h, params["w3"], params["b3"]), 0.0)
    return lin(h, params["w4"], params["b4"])


def _check(out, x, params):
    # Tight check vs a reference using the same bf16 matmul operands (the
    # kernel additionally rounds its output to bf16).
    ref_bf16 = reference_forward(x, params, use_bf16=True)
    assert jnp.allclose(out, ref_bf16, atol=1e-2, rtol=1e-2), \
        "mismatch vs bf16-operand JAX reference"
    # Loose sanity check vs the full-f32 reference (bf16 rounding tolerance).
    ref_f32 = reference_forward(x, params, use_bf16=False)
    assert jnp.allclose(out, ref_f32, atol=5e-2, rtol=5e-2), \
        "mismatch vs f32 JAX reference"


if __name__ == "__main__":
    key = jax.random.PRNGKey(0)
    k_param, k_x1, k_x2 = jax.random.split(key, 3)

    params = init_params(k_param)
    prepared = prepare_params(params)        # one-time pad+cast (hoisted)
    block_b, is_v7 = _default_config()

    # Small, non-multiple-of-16 batch -> exercises row padding, single tile.
    B1 = 50
    x1 = jax.random.normal(k_x1, (B1, 784), dtype=jnp.float32)
    out1 = jax.block_until_ready(
        bpnn_forward(x1, prepared, block_b=block_b, prefer_multicore=is_v7))
    assert out1.shape == (B1, 10)
    _check(out1, x1, params)

    # Mid-size batch with the multicore policy forced on -> exercises the
    # balanced multi-tile grid (>=2 even steps) and last-tile padding.
    B2 = 300
    x2 = jax.random.normal(k_x2, (B2, 784), dtype=jnp.float32)
    out2 = jax.block_until_ready(
        bpnn_forward(x2, prepared, block_b=512, prefer_multicore=True))
    assert out2.shape == (B2, 10)
    _check(out2, x2, params)

    print("KERNEL_OK")
</pallas_src>

<mosaic_0001>
module attributes {stable_mosaic.version = 11 : i64} {
  func.func @_mlp_kernel(%arg0: i32, %arg1: memref<64x784xf32, #tpu.memory_space<vmem>>, %arg2: memref<784x512xbf16, #tpu.memory_space<vmem>>, %arg3: memref<1x512xf32, #tpu.memory_space<vmem>>, %arg4: memref<512x256xbf16, #tpu.memory_space<vmem>>, %arg5: memref<1x256xf32, #tpu.memory_space<vmem>>, %arg6: memref<256x128xbf16, #tpu.memory_space<vmem>>, %arg7: memref<1x128xf32, #tpu.memory_space<vmem>>, %arg8: memref<128x128xbf16, #tpu.memory_space<vmem>>, %arg9: memref<1x128xf32, #tpu.memory_space<vmem>>, %arg10: memref<64x128xbf16, #tpu.memory_space<vmem>>) attributes {dimension_semantics = [#tpu.dimension_semantics<parallel>], iteration_bounds = array<i64: 1>, scalar_prefetch = 0 : i64, scratch_operands = 0 : i64, tpu.core_type = #tpu.core_type<tc>, window_params = [{transform_indices = @transform_0, window_bounds = array<i64: 64, 784>}, {pipeline_mode = #tpu.pipeline_mode<synchronous>, transform_indices = @transform_1, window_bounds = array<i64: 784, 512>}, {pipeline_mode = #tpu.pipeline_mode<synchronous>, transform_indices = @transform_2, window_bounds = array<i64: 1, 512>}, {pipeline_mode = #tpu.pipeline_mode<synchronous>, transform_indices = @transform_3, window_bounds = array<i64: 512, 256>}, {pipeline_mode = #tpu.pipeline_mode<synchronous>, transform_indices = @transform_4, window_bounds = array<i64: 1, 256>}, {pipeline_mode = #tpu.pipeline_mode<synchronous>, transform_indices = @transform_5, window_bounds = array<i64: 256, 128>}, {pipeline_mode = #tpu.pipeline_mode<synchronous>, transform_indices = @transform_6, window_bounds = array<i64: 1, 128>}, {pipeline_mode = #tpu.pipeline_mode<synchronous>, transform_indices = @transform_7, window_bounds = array<i64: 128, 128>}, {pipeline_mode = #tpu.pipeline_mode<synchronous>, transform_indices = @transform_8, window_bounds = array<i64: 1, 128>}, {transform_indices = @transform_9, window_bounds = array<i64: 64, 128>}]} {
    %c0 = arith.constant 0 : index
    %c0_0 = arith.constant 0 : index
    %0 = vector.load %arg1[%c0, %c0_0] : memref<64x784xf32, #tpu.memory_space<vmem>>, vector<64x784xf32>
    %1 = arith.truncf %0 : vector<64x784xf32> to vector<64x784xbf16>
    %c0_1 = arith.constant 0 : index
    %c0_2 = arith.constant 0 : index
    %2 = vector.load %arg2[%c0_1, %c0_2] : memref<784x512xbf16, #tpu.memory_space<vmem>>, vector<784x512xbf16>
    %cst = arith.constant dense<0.000000e+00> : vector<64x512xf32>
    %3 = tpu.matmul %1, %2, %cst {dimension_numbers = #tpu.dot_dimension_numbers<[1], [0], [0], [1], [0, 0, 1, 1], [], []>} : vector<64x784xbf16>, vector<784x512xbf16>, vector<64x512xf32> -> vector<64x512xf32>
    %c0_3 = arith.constant 0 : index
    %c0_4 = arith.constant 0 : index
    %4 = vector.load %arg3[%c0_3, %c0_4] : memref<1x512xf32, #tpu.memory_space<vmem>>, vector<1x512xf32>
    %5 = vector.broadcast %4 : vector<1x512xf32> to vector<64x512xf32>
    %6 = arith.addf %3, %5 : vector<64x512xf32>
    %cst_5 = arith.constant 0.000000e+00 : f32
    %7 = vector.broadcast %cst_5 : f32 to vector<64x512xf32>
    %8 = arith.maximumf %6, %7 : vector<64x512xf32>
    %9 = arith.truncf %8 : vector<64x512xf32> to vector<64x512xbf16>
    %c0_6 = arith.constant 0 : index
    %c0_7 = arith.constant 0 : index
    %10 = vector.load %arg4[%c0_6, %c0_7] : memref<512x256xbf16, #tpu.memory_space<vmem>>, vector<512x256xbf16>
    %cst_8 = arith.constant dense<0.000000e+00> : vector<64x256xf32>
    %11 = tpu.matmul %9, %10, %cst_8 {dimension_numbers = #tpu.dot_dimension_numbers<[1], [0], [0], [1], [0, 0, 1, 1], [], []>} : vector<64x512xbf16>, vector<512x256xbf16>, vector<64x256xf32> -> vector<64x256xf32>
    %c0_9 = arith.constant 0 : index
    %c0_10 = arith.constant 0 : index
    %12 = vector.load %arg5[%c0_9, %c0_10] : memref<1x256xf32, #tpu.memory_space<vmem>>, vector<1x256xf32>
    %13 = vector.broadcast %12 : vector<1x256xf32> to vector<64x256xf32>
    %14 = arith.addf %11, %13 : vector<64x256xf32>
    %cst_11 = arith.constant 0.000000e+00 : f32
    %15 = vector.broadcast %cst_11 : f32 to vector<64x256xf32>
    %16 = arith.maximumf %14, %15 : vector<64x256xf32>
    %17 = arith.truncf %16 : vector<64x256xf32> to vector<64x256xbf16>
    %c0_12 = arith.constant 0 : index
    %c0_13 = arith.constant 0 : index
    %18 = vector.load %arg6[%c0_12, %c0_13] : memref<256x128xbf16, #tpu.memory_space<vmem>>, vector<256x128xbf16>
    %cst_14 = arith.constant dense<0.000000e+00> : vector<64x128xf32>
    %19 = tpu.matmul %17, %18, %cst_14 {dimension_numbers = #tpu.dot_dimension_numbers<[1], [0], [0], [1], [0, 0, 1, 1], [], []>} : vector<64x256xbf16>, vector<256x128xbf16>, vector<64x128xf32> -> vector<64x128xf32>
    %c0_15 = arith.constant 0 : index
    %c0_16 = arith.constant 0 : index
    %20 = vector.load %arg7[%c0_15, %c0_16] : memref<1x128xf32, #tpu.memory_space<vmem>>, vector<1x128xf32>
    %21 = vector.broadcast %20 : vector<1x128xf32> to vector<64x128xf32>
    %22 = arith.addf %19, %21 : vector<64x128xf32>
    %cst_17 = arith.constant 0.000000e+00 : f32
    %23 = vector.broadcast %cst_17 : f32 to vector<64x128xf32>
    %24 = arith.maximumf %22, %23 : vector<64x128xf32>
    %25 = arith.truncf %24 : vector<64x128xf32> to vector<64x128xbf16>
    %c0_18 = arith.constant 0 : index
    %c0_19 = arith.constant 0 : index
    %26 = vector.load %arg8[%c0_18, %c0_19] : memref<128x128xbf16, #tpu.memory_space<vmem>>, vector<128x128xbf16>
    %cst_20 = arith.constant dense<0.000000e+00> : vector<64x128xf32>
    %27 = tpu.matmul %25, %26, %cst_20 {dimension_numbers = #tpu.dot_dimension_numbers<[1], [0], [0], [1], [0, 0, 1, 1], [], []>} : vector<64x128xbf16>, vector<128x128xbf16>, vector<64x128xf32> -> vector<64x128xf32>
    %c0_21 = arith.constant 0 : index
    %c0_22 = arith.constant 0 : index
    %28 = vector.load %arg9[%c0_21, %c0_22] : memref<1x128xf32, #tpu.memory_space<vmem>>, vector<1x128xf32>
    %29 = vector.broadcast %28 : vector<1x128xf32> to vector<64x128xf32>
    %30 = arith.addf %27, %29 : vector<64x128xf32>
    %31 = arith.truncf %30 : vector<64x128xf32> to vector<64x128xbf16>
    %c0_23 = arith.constant 0 : index
    %c0_24 = arith.constant 0 : index
    %32 = vector.load %arg10[%c0_23, %c0_24] : memref<64x128xbf16, #tpu.memory_space<vmem>>, vector<64x128xbf16>
    tpu.vector_store %arg10[%c0_23, %c0_24], %31 {strides = array<i32>} : memref<64x128xbf16, #tpu.memory_space<vmem>>, vector<64x128xbf16>,
    return
  }
  func.func @transform_0(%arg0: i32) -> (i32, i32) {
    %c0_i32 = arith.constant 0 : i32
    %c0_i32_0 = arith.constant 0 : i32
    return %arg0, %c0_i32 : i32, i32
  }
  func.func @transform_1(%arg0: i32) -> (i32, i32) {
    %c0_i32 = arith.constant 0 : i32
    %c0_i32_0 = arith.constant 0 : i32
    %c0_i32_1 = arith.constant 0 : i32
    return %c0_i32, %c0_i32_0 : i32, i32
  }
  func.func @transform_2(%arg0: i32) -> (i32, i32) {
    %c0_i32 = arith.constant 0 : i32
    %c0_i32_0 = arith.constant 0 : i32
    %c0_i32_1 = arith.constant 0 : i32
    return %c0_i32, %c0_i32_0 : i32, i32
  }
  func.func @transform_3(%arg0: i32) -> (i32, i32) {
    %c0_i32 = arith.constant 0 : i32
    %c0_i32_0 = arith.constant 0 : i32
    %c0_i32_1 = arith.constant 0 : i32
    return %c0_i32, %c0_i32_0 : i32, i32
  }
  func.func @transform_4(%arg0: i32) -> (i32, i32) {
    %c0_i32 = arith.constant 0 : i32
    %c0_i32_0 = arith.constant 0 : i32
    %c0_i32_1 = arith.constant 0 : i32
    return %c0_i32, %c0_i32_0 : i32, i32
  }
  func.func @transform_5(%arg0: i32) -> (i32, i32) {
    %c0_i32 = arith.constant 0 : i32
    %c0_i32_0 = arith.constant 0 : i32
    %c0_i32_1 = arith.constant 0 : i32
    return %c0_i32, %c0_i32_0 : i32, i32
  }
  func.func @transform_6(%arg0: i32) -> (i32, i32) {
    %c0_i32 = arith.constant 0 : i32
    %c0_i32_0 = arith.constant 0 : i32
    %c0_i32_1 = arith.constant 0 : i32
    return %c0_i32, %c0_i32_0 : i32, i32
  }
  func.func @transform_7(%arg0: i32) -> (i32, i32) {
    %c0_i32 = arith.constant 0 : i32
    %c0_i32_0 = arith.constant 0 : i32
    %c0_i32_1 = arith.constant 0 : i32
    return %c0_i32, %c0_i32_0 : i32, i32
  }
  func.func @transform_8(%arg0: i32) -> (i32, i32) {
    %c0_i32 = arith.constant 0 : i32
    %c0_i32_0 = arith.constant 0 : i32
    %c0_i32_1 = arith.constant 0 : i32
    return %c0_i32, %c0_i32_0 : i32, i32
  }
  func.func @transform_9(%arg0: i32) -> (i32, i32) {
    %c0_i32 = arith.constant 0 : i32
    %c0_i32_0 = arith.constant 0 : i32
    return %arg0, %c0_i32 : i32, i32
  }
}

</mosaic_0001>

<llo_original>
// kernel: bpnn_forward.1
$region0: #{bpnn_forward.1}
  #allocation0 [shape = 'u32[]', space=smem, size = 0x4, offset = 0x4, fixed_abs, tag = 'smem constant byte address 0x4 - core index']
  #allocation1 [shape = 'u32[144,128]{1,0:T(1,128)}', space=vmem, size = 0x12000, scoped, tag = 'internal scratch']
  %s0 = inlined_call_operand.vmem [shape: f32[64,784], index: 0, kind: input, shape index: {}]
  %s1 = inlined_call_operand.hbm [shape: bf16[784,512], index: 1, kind: input, shape index: {}]
  %s2 = inlined_call_operand.vmem [shape: f32[1,512], index: 2, kind: input, shape index: {}]
  %s3 = inlined_call_operand.vmem [shape: bf16[512,256], index: 3, kind: input, shape index: {}]
  %s4 = inlined_call_operand.vmem [shape: f32[1,256], index: 4, kind: input, shape index: {}]
  %s5 = inlined_call_operand.vmem [shape: bf16[256,128], index: 5, kind: input, shape index: {}]
  %s6 = inlined_call_operand.vmem [shape: f32[1,128], index: 6, kind: input, shape index: {}]
  %s7 = inlined_call_operand.vmem [shape: bf16[128,128], index: 7, kind: input, shape index: {}]
  %s8 = inlined_call_operand.vmem [shape: f32[1,128], index: 8, kind: input, shape index: {}]
  %s9 = inlined_call_operand.vmem [shape: bf16[64,128], index: 9, kind: output, shape index: {}]
  %s10 = sld [smem:[#allocation0]]
  $region50: #{bpnn_forward.1} parent=0
    _
  %s12 = ssub.s32 1, %s10
  %s13 = scalar_select 0, %s12, %s10
  $region1: #{bpnn_forward.1} parent=0
    #allocation2 [shape = 'u8[802816]{0}', space=vmem, size = 0xc4000, scoped, tag = 'input window, operand 1, single buffered']
    #allocation3 [shape = 's32[1]{0}', space=sflag, size = 0x4, scoped, tag = 'scoped memory for bpnn_forward.1']
    %14 = vsyncpa [#allocation3], 0
    // Predicated region
    $region2: #{bpnn_forward.1} parent=1 // pred_check
      _
    $region3: #{bpnn_forward.1} parent=1 // pred_check_branch
      %16 = sbr.rel (0) target = $region5
    $region4: #{bpnn_forward.1} parent=1 // pred_region
      _
    $region5: #{bpnn_forward.1} parent=1 // pred_fallthru
      _
    // Predicated region
    $region6: #{bpnn_forward.1} parent=1 // pred_check
      _
    $region7: #{bpnn_forward.1} parent=1 // pred_check_branch
      %18 = sbr.rel (0) target = $region9
    $region8: #{bpnn_forward.1} parent=1 // pred_region
      %s20 = ssub.s32 25088, 25088
      %21 = vsyncadd [#allocation3], %s20
      %s22 = sshll.u32 [#allocation2], 4
      %s23 = int_to_ptr.vmem [resolvable:$true] %s22
      %28 = dma.hbm_to_vmem [thread:$0]  %s1, 25088, %s23, [#allocation3], 256, 256, 16
    $region9: #{bpnn_forward.1} parent=1 // pred_fallthru
      _
    // Predicated region
    $region10: #{bpnn_forward.1} parent=1 // pred_check
      _
    $region11: #{bpnn_forward.1} parent=1 // pred_check_branch
      %30 = sbr.rel (0) target = $region13
    $region12: #{bpnn_forward.1} parent=1 // pred_region
      _
    $region13: #{bpnn_forward.1} parent=1 // pred_fallthru
      _
    // Predicated region
    $region14: #{bpnn_forward.1} parent=1 // pred_check
      _
    $region15: #{bpnn_forward.1} parent=1 // pred_check_branch
      %32 = sbr.rel (0) target = $region17
    $region16: #{bpnn_forward.1} parent=1 // pred_region
      _
    $region17: #{bpnn_forward.1} parent=1 // pred_fallthru
      _
    // Predicated region
    $region18: #{bpnn_forward.1} parent=1 // pred_check
      _
    $region19: #{bpnn_forward.1} parent=1 // pred_check_branch
      %34 = sbr.rel (0) target = $region21
    $region20: #{bpnn_forward.1} parent=1 // pred_region
      _
    $region21: #{bpnn_forward.1} parent=1 // pred_fallthru
      _
    // Predicated region
    $region22: #{bpnn_forward.1} parent=1 // pred_check
      _
    $region23: #{bpnn_forward.1} parent=1 // pred_check_branch
      %36 = sbr.rel (0) target = $region25
    $region24: #{bpnn_forward.1} parent=1 // pred_region
      _
    $region25: #{bpnn_forward.1} parent=1 // pred_fallthru
      _
    // Predicated region
    $region26: #{bpnn_forward.1} parent=1 // pred_check
      _
    $region27: #{bpnn_forward.1} parent=1 // pred_check_branch
      %38 = sbr.rel (0) target = $region29
    $region28: #{bpnn_forward.1} parent=1 // pred_region
      _
    $region29: #{bpnn_forward.1} parent=1 // pred_fallthru
      _
    // Predicated region
    $region30: #{bpnn_forward.1} parent=1 // pred_check
      _
    $region31: #{bpnn_forward.1} parent=1 // pred_check_branch
      %40 = sbr.rel (0) target = $region33
    $region32: #{bpnn_forward.1} parent=1 // pred_region
      _
    $region33: #{bpnn_forward.1} parent=1 // pred_fallthru
      _
    // Predicated region
    $region34: #{bpnn_forward.1} parent=1 // pred_check
      _
    $region35: #{bpnn_forward.1} parent=1 // pred_check_branch
      %42 = sbr.rel (0) target = $region37
    $region36: #{bpnn_forward.1} parent=1 // pred_region
      _
    $region37: #{bpnn_forward.1} parent=1 // pred_fallthru
      _
    // Predicated region
    $region38: #{bpnn_forward.1} parent=1 // pred_check
      _
    $region39: #{bpnn_forward.1} parent=1 // pred_check_branch
      %44 = sbr.rel (0) target = $region41
    $region40: #{bpnn_forward.1} parent=1 // pred_region
      %45 = dma.done [#allocation3], 25088
    $region41: #{bpnn_forward.1} parent=1 // pred_fallthru
      _
    %v47 = vld [vmem:[%s0] sm:$0xff]
    %v48 = vld [vmem:[%s0 + $0x8] sm:$0xff]
    %v49 = vld [vmem:[%s0 + $0x10] sm:$0xff]
    %v50 = vld [vmem:[%s0 + $0x18] sm:$0xff]
    %v51 = vld [vmem:[%s0 + $0x20] sm:$0xff]
    %v52 = vld [vmem:[%s0 + $0x28] sm:$0xff]
    %v53 = vld [vmem:[%s0 + $0x30] sm:$0xff]
    %v54 = vld [vmem:[%s0 + $0x38] sm:$0xff]
    %v55 = vld [vmem:[%s0 + $0x40] sm:$0xff]
    %v56 = vld [vmem:[%s0 + $0x48] sm:$0xff]
    %v57 = vld [vmem:[%s0 + $0x50] sm:$0xff]
    %v58 = vld [vmem:[%s0 + $0x58] sm:$0xff]
    %v59 = vld [vmem:[%s0 + $0x60] sm:$0xff]
    %v60 = vld [vmem:[%s0 + $0x68] sm:$0xff]
    %v61 = vld [vmem:[%s0 + $0x70] sm:$0xff]
    %v62 = vld [vmem:[%s0 + $0x78] sm:$0xff]
    %v63 = vld [vmem:[%s0 + $0x80] sm:$0xff]
    %v64 = vld [vmem:[%s0 + $0x88] sm:$0xff]
    %v65 = vld [vmem:[%s0 + $0x90] sm:$0xff]
    %v66 = vld [vmem:[%s0 + $0x98] sm:$0xff]
    %v67 = vld [vmem:[%s0 + $0xa0] sm:$0xff]
    %v68 = vld [vmem:[%s0 + $0xa8] sm:$0xff]
    %v69 = vld [vmem:[%s0 + $0xb0] sm:$0xff]
    %v70 = vld [vmem:[%s0 + $0xb8] sm:$0xff]
    %v71 = vld [vmem:[%s0 + $0xc0] sm:$0xff]
    %v72 = vld [vmem:[%s0 + $0xc8] sm:$0xff]
    %v73 = vld [vmem:[%s0 + $0xd0] sm:$0xff]
    %v74 = vld [vmem:[%s0 + $0xd8] sm:$0xff]
    %v75 = vld [vmem:[%s0 + $0xe0] sm:$0xff]
    %v76 = vld [vmem:[%s0 + $0xe8] sm:$0xff]
    %v77 = vld [vmem:[%s0 + $0xf0] sm:$0xff]
    %v78 = vld [vmem:[%s0 + $0xf8] sm:$0xff]
    %v79 = vld [vmem:[%s0 + $0x100] sm:$0xff]
    %v80 = vld [vmem:[%s0 + $0x108] sm:$0xff]
    %v81 = vld [vmem:[%s0 + $0x110] sm:$0xff]
    %v82 = vld [vmem:[%s0 + $0x118] sm:$0xff]
    %v83 = vld [vmem:[%s0 + $0x120] sm:$0xff]
    %v84 = vld [vmem:[%s0 + $0x128] sm:$0xff]
    %v85 = vld [vmem:[%s0 + $0x130] sm:$0xff]
    %v86 = vld [vmem:[%s0 + $0x138] sm:$0xff]
    %v87 = vld [vmem:[%s0 + $0x140] sm:$0xff]
    %v88 = vld [vmem:[%s0 + $0x148] sm:$0xff]
    %v89 = vld [vmem:[%s0 + $0x150] sm:$0xff]
    %v90 = vld [vmem:[%s0 + $0x158] sm:$0xff]
    %v91 = vld [vmem:[%s0 + $0x160] sm:$0xff]
    %v92 = vld [vmem:[%s0 + $0x168] sm:$0xff]
    %v93 = vld [vmem:[%s0 + $0x170] sm:$0xff]
    %v94 = vld [vmem:[%s0 + $0x178] sm:$0xff]
    %v95 = vld [vmem:[%s0 + $0x180] sm:$0xff]
    %v96 = vld [vmem:[%s0 + $0x188] sm:$0xff]
    %v97 = vld [vmem:[%s0 + $0x190] sm:$0xff]
    %v98 = vld [vmem:[%s0 + $0x198] sm:$0xff]
    %v99 = vld [vmem:[%s0 + $0x1a0] sm:$0xff]
    %v100 = vld [vmem:[%s0 + $0x1a8] sm:$0xff]
    %v101 = vld [vmem:[%s0 + $0x1b0] sm:$0xff]
    %v102 = vld [vmem:[%s0 + $0x1b8] sm:$0xff]
    %v103 = vpack.c.bf16 %v54, %v47
    %v104 = vpack.c.bf16 %v55, %v48
    %v105 = vpack.c.bf16 %v56, %v49
    %v106 = vpack.c.bf16 %v57, %v50
    %v107 = vpack.c.bf16 %v58, %v51
    %v108 = vpack.c.bf16 %v59, %v52
    %v109 = vpack.c.bf16 %v60, %v53
    %v110 = vpack.c.bf16 %v68, %v61
    %v111 = vpack.c.bf16 %v69, %v62
    %v112 = vpack.c.bf16 %v70, %v63
    %v113 = vpack.c.bf16 %v71, %v64
    %v114 = vpack.c.bf16 %v72, %v65
    %v115 = vpack.c.bf16 %v73, %v66
    %v116 = vpack.c.bf16 %v74, %v67
    %v117 = vpack.c.bf16 %v82, %v75
    %v118 = vpack.c.bf16 %v83, %v76
    %v119 = vpack.c.bf16 %v84, %v77
    %v120 = vpack.c.bf16 %v85, %v78
    %v121 = vpack.c.bf16 %v86, %v79
    %v122 = vpack.c.bf16 %v87, %v80
    %v123 = vpack.c.bf16 %v88, %v81
    %v124 = vpack.c.bf16 %v96, %v89
    %v125 = vpack.c.bf16 %v97, %v90
    %v126 = vpack.c.bf16 %v98, %v91
    %v127 = vpack.c.bf16 %v99, %v92
    %v128 = vpack.c.bf16 %v100, %v93
    %v129 = vpack.c.bf16 %v101, %v94
    %v130 = vpack.c.bf16 %v102, %v95
    %v131 = vld [vmem:[#allocation2] sm:$0xff]
    %v132 = vld [vmem:[#allocation2 + $0x8] sm:$0xff]
    %v133 = vld [vmem:[#allocation2 + $0x10] sm:$0xff]
    %v134 = vld [vmem:[#allocation2 + $0x18] sm:$0xff]
    %v135 = vld [vmem:[#allocation2 + $0x20] sm:$0xff]
    %v136 = vld [vmem:[#allocation2 + $0x28] sm:$0xff]
    %v137 = vld [vmem:[#allocation2 + $0x30] sm:$0xff]
    %v138 = vld [vmem:[#allocation2 + $0x38] sm:$0xff]
    %v139 = vld [vmem:[#allocation2 + $0x40] sm:$0xff]
    %v140 = vld [vmem:[#allocation2 + $0x48] sm:$0xff]
    %v141 = vld [vmem:[#allocation2 + $0x50] sm:$0xff]
    %v142 = vld [vmem:[#allocation2 + $0x58] sm:$0xff]
    %v143 = vld [vmem:[#allocation2 + $0x60] sm:$0xff]
    %v144 = vld [vmem:[#allocation2 + $0x68] sm:$0xff]
    %v145 = vld [vmem:[#allocation2 + $0x70] sm:$0xff]
    %v146 = vld [vmem:[#allocation2 + $0x78] sm:$0xff]
    %v147 = vld [vmem:[#allocation2 + $0x80] sm:$0xff]
    %v148 = vld [vmem:[#allocation2 + $0x88] sm:$0xff]
    %v149 = vld [vmem:[#allocation2 + $0x90] sm:$0xff]
    %v150 = vld [vmem:[#allocation2 + $0x98] sm:$0xff]
    %v151 = vld [vmem:[#allocation2 + $0xa0] sm:$0xff]
    %v152 = vld [vmem:[#allocation2 + $0xa8] sm:$0xff]
    %v153 = vld [vmem:[#allocation2 + $0xb0] sm:$0xff]
    %v154 = vld [vmem:[#allocation2 + $0xb8] sm:$0xff]
    %v155 = vld [vmem:[#allocation2 + $0xc0] sm:$0xff]
    %v156 = vld [vmem:[#allocation2 + $0xc8] sm:$0xff]
    %v157 = vld [vmem:[#allocation2 + $0xd0] sm:$0xff]
    %v158 = vld [vmem:[#allocation2 + $0xd8] sm:$0xff]
    %v159 = vld [vmem:[#allocation2 + $0xe0] sm:$0xff]
    %v160 = vld [vmem:[#allocation2 + $0xe8] sm:$0xff]
    %v161 = vld [vmem:[#allocation2 + $0xf0] sm:$0xff]
    %v162 = vld [vmem:[#allocation2 + $0xf8] sm:$0xff]
    %v163 = vld [vmem:[#allocation2 + $0x100] sm:$0xff]
    %v164 = vld [vmem:[#allocation2 + $0x108] sm:$0xff]
    %v165 = vld [vmem:[#allocation2 + $0x110] sm:$0xff]
    %v166 = vld [vmem:[#allocation2 + $0x118] sm:$0xff]
    %v167 = vld [vmem:[#allocation2 + $0x120] sm:$0xff]
    %v168 = vld [vmem:[#allocation2 + $0x128] sm:$0xff]
    %v169 = vld [vmem:[#allocation2 + $0x130] sm:$0xff]
    %v170 = vld [vmem:[#allocation2 + $0x138] sm:$0xff]
    %v171 = vld [vmem:[#allocation2 + $0x140] sm:$0xff]
    %v172 = vld [vmem:[#allocation2 + $0x148] sm:$0xff]
    %v173 = vld [vmem:[#allocation2 + $0x150] sm:$0xff]
    %v174 = vld [vmem:[#allocation2 + $0x158] sm:$0xff]
    %v175 = vld [vmem:[#allocation2 + $0x160] sm:$0xff]
    %v176 = vld [vmem:[#allocation2 + $0x168] sm:$0xff]
    %v177 = vld [vmem:[#allocation2 + $0x170] sm:$0xff]
    %v178 = vld [vmem:[#allocation2 + $0x178] sm:$0xff]
    %v179 = vld [vmem:[#allocation2 + $0x180] sm:$0xff]
    %v180 = vld [vmem:[#allocation2 + $0x188] sm:$0xff]
    %v181 = vld [vmem:[#allocation2 + $0x190] sm:$0xff]
    %v182 = vld [vmem:[#allocation2 + $0x198] sm:$0xff]
    %v183 = vld [vmem:[#allocation2 + $0x1a0] sm:$0xff]
    %v184 = vld [vmem:[#allocation2 + $0x1a8] sm:$0xff]
    %v185 = vld [vmem:[#allocation2 + $0x1b0] sm:$0xff]
    %v186 = vld [vmem:[#allocation2 + $0x1b8] sm:$0xff]
    %v187 = vld [vmem:[#allocation2 + $0x1c0] sm:$0xff]
    %v188 = vld [vmem:[#allocation2 + $0x1c8] sm:$0xff]
    %v189 = vld [vmem:[#allocation2 + $0x1d0] sm:$0xff]
    %v190 = vld [vmem:[#allocation2 + $0x1d8] sm:$0xff]
    %v191 = vld [vmem:[#allocation2 + $0x1e0] sm:$0xff]
    %v192 = vld [vmem:[#allocation2 + $0x1e8] sm:$0xff]
    %v193 = vld [vmem:[#allocation2 + $0x1f0] sm:$0xff]
    %v194 = vld [vmem:[#allocation2 + $0x1f8] sm:$0xff]
    %v195 = vld [vmem:[#allocation2 + $0x200] sm:$0xff]
    %v196 = vld [vmem:[#allocation2 + $0x208] sm:$0xff]
    %v197 = vld [vmem:[#allocation2 + $0x210] sm:$0xff]
    %v198 = vld [vmem:[#allocation2 + $0x218] sm:$0xff]
    %v199 = vld [vmem:[#allocation2 + $0x220] sm:$0xff]
    %v200 = vld [vmem:[#allocation2 + $0x228] sm:$0xff]
    %v201 = vld [vmem:[#allocation2 + $0x230] sm:$0xff]
    %v202 = vld [vmem:[#allocation2 + $0x238] sm:$0xff]
    %v203 = vld [vmem:[#allocation2 + $0x240] sm:$0xff]
    %v204 = vld [vmem:[#allocation2 + $0x248] sm:$0xff]
    %v205 = vld [vmem:[#allocation2 + $0x250] sm:$0xff]
    %v206 = vld [vmem:[#allocation2 + $0x258] sm:$0xff]
    %v207 = vld [vmem:[#allocation2 + $0x260] sm:$0xff]
    %v208 = vld [vmem:[#allocation2 + $0x268] sm:$0xff]
    %v209 = vld [vmem:[#allocation2 + $0x270] sm:$0xff]
    %v210 = vld [vmem:[#allocation2 + $0x278] sm:$0xff]
    %v211 = vld [vmem:[#allocation2 + $0x280] sm:$0xff]
    %v212 = vld [vmem:[#allocation2 + $0x288] sm:$0xff]
    %v213 = vld [vmem:[#allocation2 + $0x290] sm:$0xff]
    %v214 = vld [vmem:[#allocation2 + $0x298] sm:$0xff]
    %v215 = vld [vmem:[#allocation2 + $0x2a0] sm:$0xff]
    %v216 = vld [vmem:[#allocation2 + $0x2a8] sm:$0xff]
    %v217 = vld [vmem:[#allocation2 + $0x2b0] sm:$0xff]
    %v218 = vld [vmem:[#allocation2 + $0x2b8] sm:$0xff]
    %v219 = vld [vmem:[#allocation2 + $0x2c0] sm:$0xff]
    %v220 = vld [vmem:[#allocation2 + $0x2c8] sm:$0xff]
    %v221 = vld [vmem:[#allocation2 + $0x2d0] sm:$0xff]
    %v222 = vld [vmem:[#allocation2 + $0x2d8] sm:$0xff]
    %v223 = vld [vmem:[#allocation2 + $0x2e0] sm:$0xff]
    %v224 = vld [vmem:[#allocation2 + $0x2e8] sm:$0xff]
    %v225 = vld [vmem:[#allocation2 + $0x2f0] sm:$0xff]
    %v226 = vld [vmem:[#allocation2 + $0x2f8] sm:$0xff]
    %v227 = vld [vmem:[#allocation2 + $0x300] sm:$0xff]
    %v228 = vld [vmem:[#allocation2 + $0x308] sm:$0xff]
    %v229 = vld [vmem:[#allocation2 + $0x310] sm:$0xff]
    %v230 = vld [vmem:[#allocation2 + $0x318] sm:$0xff]
    %v231 = vld [vmem:[#allocation2 + $0x320] sm:$0xff]
    %v232 = vld [vmem:[#allocation2 + $0x328] sm:$0xff]
    %v233 = vld [vmem:[#allocation2 + $0x330] sm:$0xff]
    %v234 = vld [vmem:[#allocation2 + $0x338] sm:$0xff]
    %v235 = vld [vmem:[#allocation2 + $0x340] sm:$0xff]
    %v236 = vld [vmem:[#allocation2 + $0x348] sm:$0xff]
    %v237 = vld [vmem:[#allocation2 + $0x350] sm:$0xff]
    %v238 = vld [vmem:[#allocation2 + $0x358] sm:$0xff]
    %v239 = vld [vmem:[#allocation2 + $0x360] sm:$0xff]
    %v240 = vld [vmem:[#allocation2 + $0x368] sm:$0xff]
    %v241 = vld [vmem:[#allocation2 + $0x370] sm:$0xff]
    %v242 = vld [vmem:[#allocation2 + $0x378] sm:$0xff]
    %v243 = vld [vmem:[#allocation2 + $0x380] sm:$0xff]
    %v244 = vld [vmem:[#allocation2 + $0x388] sm:$0xff]
    %v245 = vld [vmem:[#allocation2 + $0x390] sm:$0xff]
    %v246 = vld [vmem:[#allocation2 + $0x398] sm:$0xff]
    %v247 = vld [vmem:[#allocation2 + $0x3a0] sm:$0xff]
    %v248 = vld [vmem:[#allocation2 + $0x3a8] sm:$0xff]
    %v249 = vld [vmem:[#allocation2 + $0x3b0] sm:$0xff]
    %v250 = vld [vmem:[#allocation2 + $0x3b8] sm:$0xff]
    %v251 = vld [vmem:[#allocation2 + $0x3c0] sm:$0xff]
    %v252 = vld [vmem:[#allocation2 + $0x3c8] sm:$0xff]
    %v253 = vld [vmem:[#allocation2 + $0x3d0] sm:$0xff]
    %v254 = vld [vmem:[#allocation2 + $0x3d8] sm:$0xff]
    %v255 = vld [vmem:[#allocation2 + $0x3e0] sm:$0xff]
    %v256 = vld [vmem:[#allocation2 + $0x3e8] sm:$0xff]
    %v257 = vld [vmem:[#allocation2 + $0x3f0] sm:$0xff]
    %v258 = vld [vmem:[#allocation2 + $0x3f8] sm:$0xff]
    %v259 = vld [vmem:[#allocation2 + $0x400] sm:$0xff]
    %v260 = vld [vmem:[#allocation2 + $0x408] sm:$0xff]
    %v261 = vld [vmem:[#allocation2 + $0x410] sm:$0xff]
    %v262 = vld [vmem:[#allocation2 + $0x418] sm:$0xff]
    %v263 = vld [vmem:[#allocation2 + $0x420] sm:$0xff]
    %v264 = vld [vmem:[#allocation2 + $0x428] sm:$0xff]
    %v265 = vld [vmem:[#allocation2 + $0x430] sm:$0xff]
    %v266 = vld [vmem:[#allocation2 + $0x438] sm:$0xff]
    %v267 = vld [vmem:[#allocation2 + $0x440] sm:$0xff]
    %v268 = vld [vmem:[#allocation2 + $0x448] sm:$0xff]
    %v269 = vld [vmem:[#allocation2 + $0x450] sm:$0xff]
    %v270 = vld [vmem:[#allocation2 + $0x458] sm:$0xff]
    %v271 = vld [vmem:[#allocation2 + $0x460] sm:$0xff]
    %v272 = vld [vmem:[#allocation2 + $0x468] sm:$0xff]
    %v273 = vld [vmem:[#allocation2 + $0x470] sm:$0xff]
    %v274 = vld [vmem:[#allocation2 + $0x478] sm:$0xff]
    %v275 = vld [vmem:[#allocation2 + $0x480] sm:$0xff]
    %v276 = vld [vmem:[#allocation2 + $0x488] sm:$0xff]
    %v277 = vld [vmem:[#allocation2 + $0x490] sm:$0xff]
    %v278 = vld [vmem:[#allocation2 + $0x498] sm:$0xff]
    %v279 = vld [vmem:[#allocation2 + $0x4a0] sm:$0xff]
    %v280 = vld [vmem:[#allocation2 + $0x4a8] sm:$0xff]
    %v281 = vld [vmem:[#allocation2 + $0x4b0] sm:$0xff]
    %v282 = vld [vmem:[#allocation2 + $0x4b8] sm:$0xff]
    %v283 = vld [vmem:[#allocation2 + $0x4c0] sm:$0xff]
    %v284 = vld [vmem:[#allocation2 + $0x4c8] sm:$0xff]
    %v285 = vld [vmem:[#allocation2 + $0x4d0] sm:$0xff]
    %v286 = vld [vmem:[#allocation2 + $0x4d8] sm:$0xff]
    %v287 = vld [vmem:[#allocation2 + $0x4e0] sm:$0xff]
    %v288 = vld [vmem:[#allocation2 + $0x4e8] sm:$0xff]
    %v289 = vld [vmem:[#allocation2 + $0x4f0] sm:$0xff]
    %v290 = vld [vmem:[#allocation2 + $0x4f8] sm:$0xff]
    %v291 = vld [vmem:[#allocation2 + $0x500] sm:$0xff]
    %v292 = vld [vmem:[#allocation2 + $0x508] sm:$0xff]
    %v293 = vld [vmem:[#allocation2 + $0x510] sm:$0xff]
    %v294 = vld [vmem:[#allocation2 + $0x518] sm:$0xff]
    %v295 = vld [vmem:[#allocation2 + $0x520] sm:$0xff]
    %v296 = vld [vmem:[#allocation2 + $0x528] sm:$0xff]
    %v297 = vld [vmem:[#allocation2 + $0x530] sm:$0xff]
    %v298 = vld [vmem:[#allocation2 + $0x538] sm:$0xff]
    %v299 = vld [vmem:[#allocation2 + $0x540] sm:$0xff]
    %v300 = vld [vmem:[#allocation2 + $0x548] sm:$0xff]
    %v301 = vld [vmem:[#allocation2 + $0x550] sm:$0xff]
    %v302 = vld [vmem:[#allocation2 + $0x558] sm:$0xff]
    %v303 = vld [vmem:[#allocation2 + $0x560] sm:$0xff]
    %v304 = vld [vmem:[#allocation2 + $0x568] sm:$0xff]
    %v305 = vld [vmem:[#allocation2 + $0x570] sm:$0xff]
    %v306 = vld [vmem:[#allocation2 + $0x578] sm:$0xff]
    %v307 = vld [vmem:[#allocation2 + $0x580] sm:$0xff]
    %v308 = vld [vmem:[#allocation2 + $0x588] sm:$0xff]
    %v309 = vld [vmem:[#allocation2 + $0x590] sm:$0xff]
    %v310 = vld [vmem:[#allocation2 + $0x598] sm:$0xff]
    %v311 = vld [vmem:[#allocation2 + $0x5a0] sm:$0xff]
    %v312 = vld [vmem:[#allocation2 + $0x5a8] sm:$0xff]
    %v313 = vld [vmem:[#allocation2 + $0x5b0] sm:$0xff]
    %v314 = vld [vmem:[#allocation2 + $0x5b8] sm:$0xff]
    %v315 = vld [vmem:[#allocation2 + $0x5c0] sm:$0xff]
    %v316 = vld [vmem:[#allocation2 + $0x5c8] sm:$0xff]
    %v317 = vld [vmem:[#allocation2 + $0x5d0] sm:$0xff]
    %v318 = vld [vmem:[#allocation2 + $0x5d8] sm:$0xff]
    %v319 = vld [vmem:[#allocation2 + $0x5e0] sm:$0xff]
    %v320 = vld [vmem:[#allocation2 + $0x5e8] sm:$0xff]
    %v321 = vld [vmem:[#allocation2 + $0x5f0] sm:$0xff]
    %v322 = vld [vmem:[#allocation2 + $0x5f8] sm:$0xff]
    %v323 = vld [vmem:[#allocation2 + $0x600] sm:$0xff]
    %v324 = vld [vmem:[#allocation2 + $0x608] sm:$0xff]
    %v325 = vld [vmem:[#allocation2 + $0x610] sm:$0xff]
    %v326 = vld [vmem:[#allocation2 + $0x618] sm:$0xff]
    %v327 = vld [vmem:[%s2] sm:$0xf]
    %v329 = vlaneseq
    %v330 = vshrl.u32 %v329, 7
    %v331 = vsub.s32 0, %v330
    %v332 = vrot.slane %v327, %v331
    %v333 = vlaneseq
    %v334 = vshrl.u32 %v333, 7
    %v335 = vsub.s32 1, %v334
    %v336 = vrot.slane %v327, %v335
    %v337 = vlaneseq
    %v338 = vshrl.u32 %v337, 7
    %v339 = vsub.s32 2, %v338
    %v340 = vrot.slane %v327, %v339
    %v341 = vlaneseq
    %v342 = vshrl.u32 %v341, 7
    %v343 = vsub.s32 3, %v342
    %v344 = vrot.slane %v327, %v343
    %v545 = vunpack.c.l.b16 %v131
    %v546 = vunpack.c.h.b16 %v131
    %v547 = vunpack.c.l.b16 %v132
    %v548 = vunpack.c.h.b16 %v132
    %v549 = vunpack.c.l.b16 %v133
    %v550 = vunpack.c.h.b16 %v133
    %v551 = vunpack.c.l.b16 %v134
    %v552 = vunpack.c.h.b16 %v134
    %v553 = vunpack.c.l.b16 %v135
    %v554 = vunpack.c.h.b16 %v135
    %v555 = vunpack.c.l.b16 %v136
    %v556 = vunpack.c.h.b16 %v136
    %v557 = vunpack.c.l.b16 %v137
    %v558 = vunpack.c.h.b16 %v137
    %v559 = vunpack.c.l.b16 %v138
    %v560 = vunpack.c.h.b16 %v138
    %v561 = vunpack.c.l.b16 %v139
    %v562 = vunpack.c.h.b16 %v139
    %v563 = vunpack.c.l.b16 %v140
    %v564 = vunpack.c.h.b16 %v140
    %v565 = vunpack.c.l.b16 %v141
    %v566 = vunpack.c.h.b16 %v141
    %v567 = vunpack.c.l.b16 %v142
    %v568 = vunpack.c.h.b16 %v142
    %v569 = vunpack.c.l.b16 %v143
    %v570 = vunpack.c.h.b16 %v143
    %v571 = vunpack.c.l.b16 %v144
    %v572 = vunpack.c.h.b16 %v144
    %v573 = vunpack.c.l.b16 %v145
    %v574 = vunpack.c.h.b16 %v145
    %v575 = vunpack.c.l.b16 %v146
    %v576 = vunpack.c.h.b16 %v146
    %v577 = vunpack.c.l.b16 %v147
    %v578 = vunpack.c.h.b16 %v147
    %v579 = vunpack.c.l.b16 %v148
    %v580 = vunpack.c.h.b16 %v148
    %v581 = vunpack.c.l.b16 %v149
    %v582 = vunpack.c.h.b16 %v149
    %v583 = vunpack.c.l.b16 %v150
    %v584 = vunpack.c.h.b16 %v150
    %v585 = vunpack.c.l.b16 %v151
    %v586 = vunpack.c.h.b16 %v151
    %v587 = vunpack.c.l.b16 %v152
    %v588 = vunpack.c.h.b16 %v152
    %v589 = vunpack.c.l.b16 %v153
    %v590 = vunpack.c.h.b16 %v153
    %v591 = vunpack.c.l.b16 %v154
    %v592 = vunpack.c.h.b16 %v154
    %v593 = vunpack.c.l.b16 %v155
    %v594 = vunpack.c.h.b16 %v155
    %v595 = vunpack.c.l.b16 %v156
    %v596 = vunpack.c.h.b16 %v156
    %v597 = vunpack.c.l.b16 %v157
    %v598 = vunpack.c.h.b16 %v157
    %v599 = vunpack.c.l.b16 %v158
    %v600 = vunpack.c.h.b16 %v158
    %v601 = vunpack.c.l.b16 %v159
    %v602 = vunpack.c.h.b16 %v159
    %v603 = vunpack.c.l.b16 %v160
    %v604 = vunpack.c.h.b16 %v160
    %v605 = vunpack.c.l.b16 %v161
    %v606 = vunpack.c.h.b16 %v161
    %v607 = vunpack.c.l.b16 %v162
    %v608 = vunpack.c.h.b16 %v162
    %v609 = vunpack.c.l.b16 %v163
    %v610 = vunpack.c.h.b16 %v163
    %v611 = vunpack.c.l.b16 %v164
    %v612 = vunpack.c.h.b16 %v164
    %v613 = vunpack.c.l.b16 %v165
    %v614 = vunpack.c.h.b16 %v165
    %v615 = vunpack.c.l.b16 %v166
    %v616 = vunpack.c.h.b16 %v166
    %v617 = vunpack.c.l.b16 %v167
    %v618 = vunpack.c.h.b16 %v167
    %v619 = vunpack.c.l.b16 %v168
    %v620 = vunpack.c.h.b16 %v168
    %v621 = vunpack.c.l.b16 %v169
    %v622 = vunpack.c.h.b16 %v169
    %v623 = vunpack.c.l.b16 %v170
    %v624 = vunpack.c.h.b16 %v170
    %v625 = vunpack.c.l.b16 %v171
    %v626 = vunpack.c.h.b16 %v171
    %v627 = vunpack.c.l.b16 %v172
    %v628 = vunpack.c.h.b16 %v172
    %v629 = vunpack.c.l.b16 %v173
    %v630 = vunpack.c.h.b16 %v173
    %v631 = vunpack.c.l.b16 %v174
    %v632 = vunpack.c.h.b16 %v174
    %v633 = vunpack.c.l.b16 %v175
    %v634 = vunpack.c.h.b16 %v175
    %v635 = vunpack.c.l.b16 %v176
    %v636 = vunpack.c.h.b16 %v176
    %v637 = vunpack.c.l.b16 %v177
    %v638 = vunpack.c.h.b16 %v177
    %v639 = vunpack.c.l.b16 %v178
    %v640 = vunpack.c.h.b16 %v178
    %v641 = vunpack.c.l.b16 %v179
    %v642 = vunpack.c.h.b16 %v179
    %v643 = vunpack.c.l.b16 %v180
    %v644 = vunpack.c.h.b16 %v180
    %v645 = vunpack.c.l.b16 %v181
    %v646 = vunpack.c.h.b16 %v181
    %v647 = vunpack.c.l.b16 %v182
    %v648 = vunpack.c.h.b16 %v182
    %v649 = vunpack.c.l.b16 %v183
    %v650 = vunpack.c.h.b16 %v183
    %v651 = vunpack.c.l.b16 %v184
    %v652 = vunpack.c.h.b16 %v184
    %v653 = vunpack.c.l.b16 %v185
    %v654 = vunpack.c.h.b16 %v185
    %v655 = vunpack.c.l.b16 %v186
    %v656 = vunpack.c.h.b16 %v186
    %v657 = vunpack.c.l.b16 %v187
    %v658 = vunpack.c.h.b16 %v187
    %v659 = vunpack.c.l.b16 %v188
    %v660 = vunpack.c.h.b16 %v188
    %v661 = vunpack.c.l.b16 %v189
    %v662 = vunpack.c.h.b16 %v189
    %v663 = vunpack.c.l.b16 %v190
    %v664 = vunpack.c.h.b16 %v190
    %v665 = vunpack.c.l.b16 %v191
    %v666 = vunpack.c.h.b16 %v191
    %v667 = vunpack.c.l.b16 %v192
    %v668 = vunpack.c.h.b16 %v192
    %v669 = vunpack.c.l.b16 %v193
    %v670 = vunpack.c.h.b16 %v193
    %v671 = vunpack.c.l.b16 %v194
    %v672 = vunpack.c.h.b16 %v194
    %v673 = vunpack.c.l.b16 %v195
    %v674 = vunpack.c.h.b16 %v195
    %v675 = vunpack.c.l.b16 %v196
    %v676 = vunpack.c.h.b16 %v196
    %v677 = vunpack.c.l.b16 %v197
    %v678 = vunpack.c.h.b16 %v197
    %v679 = vunpack.c.l.b16 %v198
    %v680 = vunpack.c.h.b16 %v198
    %v681 = vunpack.c.l.b16 %v199
    %v682 = vunpack.c.h.b16 %v199
    %v683 = vunpack.c.l.b16 %v200
    %v684 = vunpack.c.h.b16 %v200
    %v685 = vunpack.c.l.b16 %v201
    %v686 = vunpack.c.h.b16 %v201
    %v687 = vunpack.c.l.b16 %v202
    %v688 = vunpack.c.h.b16 %v202
    %v689 = vunpack.c.l.b16 %v203
    %v690 = vunpack.c.h.b16 %v203
    %v691 = vunpack.c.l.b16 %v204
    %v692 = vunpack.c.h.b16 %v204
    %v693 = vunpack.c.l.b16 %v205
    %v694 = vunpack.c.h.b16 %v205
    %v695 = vunpack.c.l.b16 %v206
    %v696 = vunpack.c.h.b16 %v206
    %v697 = vunpack.c.l.b16 %v207
    %v698 = vunpack.c.h.b16 %v207
    %v699 = vunpack.c.l.b16 %v208
    %v700 = vunpack.c.h.b16 %v208
    %v701 = vunpack.c.l.b16 %v209
    %v702 = vunpack.c.h.b16 %v209
    %v703 = vunpack.c.l.b16 %v210
    %v704 = vunpack.c.h.b16 %v210
    %v705 = vunpack.c.l.b16 %v211
    %v706 = vunpack.c.h.b16 %v211
    %v707 = vunpack.c.l.b16 %v212
    %v708 = vunpack.c.h.b16 %v212
    %v709 = vunpack.c.l.b16 %v213
    %v710 = vunpack.c.h.b16 %v213
    %v711 = vunpack.c.l.b16 %v214
    %v712 = vunpack.c.h.b16 %v214
    %v713 = vunpack.c.l.b16 %v215
    %v714 = vunpack.c.h.b16 %v215
    %v715 = vunpack.c.l.b16 %v216
    %v716 = vunpack.c.h.b16 %v216
    %v717 = vunpack.c.l.b16 %v217
    %v718 = vunpack.c.h.b16 %v217
    %v719 = vunpack.c.l.b16 %v218
    %v720 = vunpack.c.h.b16 %v218
    %v721 = vunpack.c.l.b16 %v219
    %v722 = vunpack.c.h.b16 %v219
    %v723 = vunpack.c.l.b16 %v220
    %v724 = vunpack.c.h.b16 %v220
    %v725 = vunpack.c.l.b16 %v221
    %v726 = vunpack.c.h.b16 %v221
    %v727 = vunpack.c.l.b16 %v222
    %v728 = vunpack.c.h.b16 %v222
    %v729 = vunpack.c.l.b16 %v223
    %v730 = vunpack.c.h.b16 %v223
    %v731 = vunpack.c.l.b16 %v224
    %v732 = vunpack.c.h.b16 %v224
    %v733 = vunpack.c.l.b16 %v225
    %v734 = vunpack.c.h.b16 %v225
    %v735 = vunpack.c.l.b16 %v226
    %v736 = vunpack.c.h.b16 %v226
    %v737 = vunpack.c.l.b16 %v227
    %v738 = vunpack.c.h.b16 %v227
    %v739 = vunpack.c.l.b16 %v228
    %v740 = vunpack.c.h.b16 %v228
    %v741 = vunpack.c.l.b16 %v229
    %v742 = vunpack.c.h.b16 %v229
    %v743 = vunpack.c.l.b16 %v230
    %v744 = vunpack.c.h.b16 %v230
    %v745 = vunpack.c.l.b16 %v231
    %v746 = vunpack.c.h.b16 %v231
    %v747 = vunpack.c.l.b16 %v232
    %v748 = vunpack.c.h.b16 %v232
    %v749 = vunpack.c.l.b16 %v233
    %v750 = vunpack.c.h.b16 %v233
    %v751 = vunpack.c.l.b16 %v234
    %v752 = vunpack.c.h.b16 %v234
    %v753 = vunpack.c.l.b16 %v235
    %v754 = vunpack.c.h.b16 %v235
    %v755 = vunpack.c.l.b16 %v236
    %v756 = vunpack.c.h.b16 %v236
    %v757 = vunpack.c.l.b16 %v237
    %v758 = vunpack.c.h.b16 %v237
    %v759 = vunpack.c.l.b16 %v238
    %v760 = vunpack.c.h.b16 %v238
    %v761 = vunpack.c.l.b16 %v239
    %v762 = vunpack.c.h.b16 %v239
    %v763 = vunpack.c.l.b16 %v240
    %v764 = vunpack.c.h.b16 %v240
    %v765 = vunpack.c.l.b16 %v241
    %v766 = vunpack.c.h.b16 %v241
    %v767 = vunpack.c.l.b16 %v242
    %v768 = vunpack.c.h.b16 %v242
    %v769 = vunpack.c.l.b16 %v243
    %v770 = vunpack.c.h.b16 %v243
    %v771 = vunpack.c.l.b16 %v244
    %v772 = vunpack.c.h.b16 %v244
    %v773 = vunpack.c.l.b16 %v245
    %v774 = vunpack.c.h.b16 %v245
    %v775 = vunpack.c.l.b16 %v246
    %v776 = vunpack.c.h.b16 %v246
    %v777 = vunpack.c.l.b16 %v247
    %v778 = vunpack.c.h.b16 %v247
    %v779 = vunpack.c.l.b16 %v248
    %v780 = vunpack.c.h.b16 %v248
    %v781 = vunpack.c.l.b16 %v249
    %v782 = vunpack.c.h.b16 %v249
    %v783 = vunpack.c.l.b16 %v250
    %v784 = vunpack.c.h.b16 %v250
    %v785 = vunpack.c.l.b16 %v251
    %v786 = vunpack.c.h.b16 %v251
    %v787 = vunpack.c.l.b16 %v252
    %v788 = vunpack.c.h.b16 %v252
    %v789 = vunpack.c.l.b16 %v253
    %v790 = vunpack.c.h.b16 %v253
    %v791 = vunpack.c.l.b16 %v254
    %v792 = vunpack.c.h.b16 %v254
    %v793 = vunpack.c.l.b16 %v255
    %v794 = vunpack.c.h.b16 %v255
    %v795 = vunpack.c.l.b16 %v256
    %v796 = vunpack.c.h.b16 %v256
    %v797 = vunpack.c.l.b16 %v257
    %v798 = vunpack.c.h.b16 %v257
    %v799 = vunpack.c.l.b16 %v258
    %v800 = vunpack.c.h.b16 %v258
    %v801 = vunpack.c.l.b16 %v259
    %v802 = vunpack.c.h.b16 %v259
    %v803 = vunpack.c.l.b16 %v260
    %v804 = vunpack.c.h.b16 %v260
    %v805 = vunpack.c.l.b16 %v261
    %v806 = vunpack.c.h.b16 %v261
    %v807 = vunpack.c.l.b16 %v262
    %v808 = vunpack.c.h.b16 %v262
    %v809 = vunpack.c.l.b16 %v263
    %v810 = vunpack.c.h.b16 %v263
    %v811 = vunpack.c.l.b16 %v264
    %v812 = vunpack.c.h.b16 %v264
    %v813 = vunpack.c.l.b16 %v265
    %v814 = vunpack.c.h.b16 %v265
    %v815 = vunpack.c.l.b16 %v266
    %v816 = vunpack.c.h.b16 %v266
    %v817 = vunpack.c.l.b16 %v267
    %v818 = vunpack.c.h.b16 %v267
    %v819 = vunpack.c.l.b16 %v268
    %v820 = vunpack.c.h.b16 %v268
    %v821 = vunpack.c.l.b16 %v269
    %v822 = vunpack.c.h.b16 %v269
    %v823 = vunpack.c.l.b16 %v270
    %v824 = vunpack.c.h.b16 %v270
    %v825 = vunpack.c.l.b16 %v271
    %v826 = vunpack.c.h.b16 %v271
    %v827 = vunpack.c.l.b16 %v272
    %v828 = vunpack.c.h.b16 %v272
    %v829 = vunpack.c.l.b16 %v273
    %v830 = vunpack.c.h.b16 %v273
    %v831 = vunpack.c.l.b16 %v274
    %v832 = vunpack.c.h.b16 %v274
    %v833 = vunpack.c.l.b16 %v275
    %v834 = vunpack.c.h.b16 %v275
    %v835 = vunpack.c.l.b16 %v276
    %v836 = vunpack.c.h.b16 %v276
    %v837 = vunpack.c.l.b16 %v277
    %v838 = vunpack.c.h.b16 %v277
    %v839 = vunpack.c.l.b16 %v278
    %v840 = vunpack.c.h.b16 %v278
    %v841 = vunpack.c.l.b16 %v279
    %v842 = vunpack.c.h.b16 %v279
    %v843 = vunpack.c.l.b16 %v280
    %v844 = vunpack.c.h.b16 %v280
    %v845 = vunpack.c.l.b16 %v281
    %v846 = vunpack.c.h.b16 %v281
    %v847 = vunpack.c.l.b16 %v282
    %v848 = vunpack.c.h.b16 %v282
    %v849 = vunpack.c.l.b16 %v283
    %v850 = vunpack.c.h.b16 %v283
    %v851 = vunpack.c.l.b16 %v284
    %v852 = vunpack.c.h.b16 %v284
    %v853 = vunpack.c.l.b16 %v285
    %v854 = vunpack.c.h.b16 %v285
    %v855 = vunpack.c.l.b16 %v286
    %v856 = vunpack.c.h.b16 %v286
    %v857 = vunpack.c.l.b16 %v287
    %v858 = vunpack.c.h.b16 %v287
    %v859 = vunpack.c.l.b16 %v288
    %v860 = vunpack.c.h.b16 %v288
    %v861 = vunpack.c.l.b16 %v289
    %v862 = vunpack.c.h.b16 %v289
    %v863 = vunpack.c.l.b16 %v290
    %v864 = vunpack.c.h.b16 %v290
    %v865 = vunpack.c.l.b16 %v291
    %v866 = vunpack.c.h.b16 %v291
    %v867 = vunpack.c.l.b16 %v292
    %v868 = vunpack.c.h.b16 %v292
    %v869 = vunpack.c.l.b16 %v293
    %v870 = vunpack.c.h.b16 %v293
    %v871 = vunpack.c.l.b16 %v294
    %v872 = vunpack.c.h.b16 %v294
    %v873 = vunpack.c.l.b16 %v295
    %v874 = vunpack.c.h.b16 %v295
    %v875 = vunpack.c.l.b16 %v296
    %v876 = vunpack.c.h.b16 %v296
    %v877 = vunpack.c.l.b16 %v297
    %v878 = vunpack.c.h.b16 %v297
    %v879 = vunpack.c.l.b16 %v298
    %v880 = vunpack.c.h.b16 %v298
    %v881 = vunpack.c.l.b16 %v299
    %v882 = vunpack.c.h.b16 %v299
    %v883 = vunpack.c.l.b16 %v300
    %v884 = vunpack.c.h.b16 %v300
    %v885 = vunpack.c.l.b16 %v301
    %v886 = vunpack.c.h.b16 %v301
    %v887 = vunpack.c.l.b16 %v302
    %v888 = vunpack.c.h.b16 %v302
    %v889 = vunpack.c.l.b16 %v303
    %v890 = vunpack.c.h.b16 %v303
    %v891 = vunpack.c.l.b16 %v304
    %v892 = vunpack.c.h.b16 %v304
    %v893 = vunpack.c.l.b16 %v305
    %v894 = vunpack.c.h.b16 %v305
    %v895 = vunpack.c.l.b16 %v306
    %v896 = vunpack.c.h.b16 %v306
    %v897 = vunpack.c.l.b16 %v307
    %v898 = vunpack.c.h.b16 %v307
    %v899 = vunpack.c.l.b16 %v308
    %v900 = vunpack.c.h.b16 %v308
    %v901 = vunpack.c.l.b16 %v309
    %v902 = vunpack.c.h.b16 %v309
    %v903 = vunpack.c.l.b16 %v310
    %v904 = vunpack.c.h.b16 %v310
    %v905 = vunpack.c.l.b16 %v311
    %v906 = vunpack.c.h.b16 %v311
    %v907 = vunpack.c.l.b16 %v312
    %v908 = vunpack.c.h.b16 %v312
    %v909 = vunpack.c.l.b16 %v313
    %v910 = vunpack.c.h.b16 %v313
    %v911 = vunpack.c.l.b16 %v314
    %v912 = vunpack.c.h.b16 %v314
    %v913 = vunpack.c.l.b16 %v315
    %v914 = vunpack.c.h.b16 %v315
    %v915 = vunpack.c.l.b16 %v316
    %v916 = vunpack.c.h.b16 %v316
    %v917 = vunpack.c.l.b16 %v317
    %v918 = vunpack.c.h.b16 %v317
    %v919 = vunpack.c.l.b16 %v318
    %v920 = vunpack.c.h.b16 %v318
    %v921 = vunpack.c.l.b16 %v319
    %v922 = vunpack.c.h.b16 %v319
    %v923 = vunpack.c.l.b16 %v320
    %v924 = vunpack.c.h.b16 %v320
    %v925 = vunpack.c.l.b16 %v321
    %v926 = vunpack.c.h.b16 %v321
    %v927 = vunpack.c.l.b16 %v322
    %v928 = vunpack.c.h.b16 %v322
    %v929 = vunpack.c.l.b16 %v323
    %v930 = vunpack.c.h.b16 %v323
    %v931 = vunpack.c.l.b16 %v324
    %v932 = vunpack.c.h.b16 %v324
    %v933 = vunpack.c.l.b16 %v325
    %v934 = vunpack.c.h.b16 %v325
    %v935 = vunpack.c.l.b16 %v326
    %v936 = vunpack.c.h.b16 %v326
    %v937 = vpack.c.b16 %v549, %v545
    %v938 = vpack.c.b16 %v550, %v546
    %v939 = vpack.c.b16 %v551, %v547
    %v940 = vpack.c.b16 %v552, %v548
    %v941 = vpack.c.b16 %v557, %v553
    %v942 = vpack.c.b16 %v558, %v554
    %v943 = vpack.c.b16 %v559, %v555
    %v944 = vpack.c.b16 %v560, %v556
    %v945 = vpack.c.b16 %v565, %v561
    %v946 = vpack.c.b16 %v566, %v562
    %v947 = vpack.c.b16 %v567, %v563
    %v948 = vpack.c.b16 %v568, %v564
    %v949 = vpack.c.b16 %v573, %v569
    %v950 = vpack.c.b16 %v574, %v570
    %v951 = vpack.c.b16 %v575, %v571
    %v952 = vpack.c.b16 %v576, %v572
    %v953 = vpack.c.b16 %v581, %v577
    %v954 = vpack.c.b16 %v582, %v578
    %v955 = vpack.c.b16 %v583, %v579
    %v956 = vpack.c.b16 %v584, %v580
    %v957 = vpack.c.b16 %v589, %v585
    %v958 = vpack.c.b16 %v590, %v586
    %v959 = vpack.c.b16 %v591, %v587
    %v960 = vpack.c.b16 %v592, %v588
    %v961 = vpack.c.b16 %v597, %v593
    %v962 = vpack.c.b16 %v598, %v594
    %v963 = vpack.c.b16 %v599, %v595
    %v964 = vpack.c.b16 %v600, %v596
    %v965 = vpack.c.b16 %v605, %v601
    %v966 = vpack.c.b16 %v606, %v602
    %v967 = vpack.c.b16 %v607, %v603
    %v968 = vpack.c.b16 %v608, %v604
    %v969 = vpack.c.b16 %v613, %v609
    %v970 = vpack.c.b16 %v614, %v610
    %v971 = vpack.c.b16 %v615, %v611
    %v972 = vpack.c.b16 %v616, %v612
    %v973 = vpack.c.b16 %v621, %v617
    %v974 = vpack.c.b16 %v622, %v618
    %v975 = vpack.c.b16 %v623, %v619
    %v976 = vpack.c.b16 %v624, %v620
    %v977 = vpack.c.b16 %v629, %v625
    %v978 = vpack.c.b16 %v630, %v626
    %v979 = vpack.c.b16 %v631, %v627
    %v980 = vpack.c.b16 %v632, %v628
    %v981 = vpack.c.b16 %v637, %v633
    %v982 = vpack.c.b16 %v638, %v634
    %v983 = vpack.c.b16 %v639, %v635
    %v984 = vpack.c.b16 %v640, %v636
    %v985 = vpack.c.b16 %v645, %v641
    %v986 = vpack.c.b16 %v646, %v642
    %v987 = vpack.c.b16 %v647, %v643
    %v988 = vpack.c.b16 %v648, %v644
    %v989 = vpack.c.b16 %v653, %v649
    %v990 = vpack.c.b16 %v654, %v650
    %v991 = vpack.c.b16 %v655, %v651
    %v992 = vpack.c.b16 %v656, %v652
    %v993 = vpack.c.b16 %v661, %v657
    %v994 = vpack.c.b16 %v662, %v658
    %v995 = vpack.c.b16 %v663, %v659
    %v996 = vpack.c.b16 %v664, %v660
    %v997 = vpack.c.b16 %v669, %v665
    %v998 = vpack.c.b16 %v670, %v666
    %v999 = vpack.c.b16 %v671, %v667
    %v1000 = vpack.c.b16 %v672, %v668
    %v1001 = vpack.c.b16 %v677, %v673
    %v1002 = vpack.c.b16 %v678, %v674
    %v1003 = vpack.c.b16 %v679, %v675
    %v1004 = vpack.c.b16 %v680, %v676
    %v1005 = vpack.c.b16 %v685, %v681
    %v1006 = vpack.c.b16 %v686, %v682
    %v1007 = vpack.c.b16 %v687, %v683
    %v1008 = vpack.c.b16 %v688, %v684
    %v1009 = vpack.c.b16 %v693, %v689
    %v1010 = vpack.c.b16 %v694, %v690
    %v1011 = vpack.c.b16 %v695, %v691
    %v1012 = vpack.c.b16 %v696, %v692
    %v1013 = vpack.c.b16 %v701, %v697
    %v1014 = vpack.c.b16 %v702, %v698
    %v1015 = vpack.c.b16 %v703, %v699
    %v1016 = vpack.c.b16 %v704, %v700
    %v1017 = vpack.c.b16 %v709, %v705
    %v1018 = vpack.c.b16 %v710, %v706
    %v1019 = vpack.c.b16 %v711, %v707
    %v1020 = vpack.c.b16 %v712, %v708
    %v1021 = vpack.c.b16 %v717, %v713
    %v1022 = vpack.c.b16 %v718, %v714
    %v1023 = vpack.c.b16 %v719, %v715
    %v1024 = vpack.c.b16 %v720, %v716
    %v1025 = vpack.c.b16 %v725, %v721
    %v1026 = vpack.c.b16 %v726, %v722
    %v1027 = vpack.c.b16 %v727, %v723
    %v1028 = vpack.c.b16 %v728, %v724
    %v1029 = vpack.c.b16 %v733, %v729
    %v1030 = vpack.c.b16 %v734, %v730
    %v1031 = vpack.c.b16 %v735, %v731
    %v1032 = vpack.c.b16 %v736, %v732
    %v1033 = vpack.c.b16 %v741, %v737
    %v1034 = vpack.c.b16 %v742, %v738
    %v1035 = vpack.c.b16 %v743, %v739
    %v1036 = vpack.c.b16 %v744, %v740
    %v1037 = vpack.c.b16 %v749, %v745
    %v1038 = vpack.c.b16 %v750, %v746
    %v1039 = vpack.c.b16 %v751, %v747
    %v1040 = vpack.c.b16 %v752, %v748
    %v1041 = vpack.c.b16 %v757, %v753
    %v1042 = vpack.c.b16 %v758, %v754
    %v1043 = vpack.c.b16 %v759, %v755
    %v1044 = vpack.c.b16 %v760, %v756
    %v1045 = vpack.c.b16 %v765, %v761
    %v1046 = vpack.c.b16 %v766, %v762
    %v1047 = vpack.c.b16 %v767, %v763
    %v1048 = vpack.c.b16 %v768, %v764
    %v1049 = vpack.c.b16 %v773, %v769
    %v1050 = vpack.c.b16 %v774, %v770
    %v1051 = vpack.c.b16 %v775, %v771
    %v1052 = vpack.c.b16 %v776, %v772
    %v1053 = vpack.c.b16 %v781, %v777
    %v1054 = vpack.c.b16 %v782, %v778
    %v1055 = vpack.c.b16 %v783, %v779
    %v1056 = vpack.c.b16 %v784, %v780
    %v1057 = vpack.c.b16 %v789, %v785
    %v1058 = vpack.c.b16 %v790, %v786
    %v1059 = vpack.c.b16 %v791, %v787
    %v1060 = vpack.c.b16 %v792, %v788
    %v1061 = vpack.c.b16 %v797, %v793
    %v1062 = vpack.c.b16 %v798, %v794
    %v1063 = vpack.c.b16 %v799, %v795
    %v1064 = vpack.c.b16 %v800, %v796
    %v1065 = vpack.c.b16 %v805, %v801
    %v1066 = vpack.c.b16 %v806, %v802
    %v1067 = vpack.c.b16 %v807, %v803
    %v1068 = vpack.c.b16 %v808, %v804
    %v1069 = vpack.c.b16 %v813, %v809
    %v1070 = vpack.c.b16 %v814, %v810
    %v1071 = vpack.c.b16 %v815, %v811
    %v1072 = vpack.c.b16 %v816, %v812
    %v1073 = vpack.c.b16 %v821, %v817
    %v1074 = vpack.c.b16 %v822, %v818
    %v1075 = vpack.c.b16 %v823, %v819
    %v1076 = vpack.c.b16 %v824, %v820
    %v1077 = vpack.c.b16 %v829, %v825
    %v1078 = vpack.c.b16 %v830, %v826
    %v1079 = vpack.c.b16 %v831, %v827
    %v1080 = vpack.c.b16 %v832, %v828
    %v1081 = vpack.c.b16 %v837, %v833
    %v1082 = vpack.c.b16 %v838, %v834
    %v1083 = vpack.c.b16 %v839, %v835
    %v1084 = vpack.c.b16 %v840, %v836
    %v1085 = vpack.c.b16 %v845, %v841
    %v1086 = vpack.c.b16 %v846, %v842
    %v1087 = vpack.c.b16 %v847, %v843
    %v1088 = vpack.c.b16 %v848, %v844
    %v1089 = vpack.c.b16 %v853, %v849
    %v1090 = vpack.c.b16 %v854, %v850
    %v1091 = vpack.c.b16 %v855, %v851
    %v1092 = vpack.c.b16 %v856, %v852
    %v1093 = vpack.c.b16 %v861, %v857
    %v1094 = vpack.c.b16 %v862, %v858
    %v1095 = vpack.c.b16 %v863, %v859
    %v1096 = vpack.c.b16 %v864, %v860
    %v1097 = vpack.c.b16 %v869, %v865
    %v1098 = vpack.c.b16 %v870, %v866
    %v1099 = vpack.c.b16 %v871, %v867
    %v1100 = vpack.c.b16 %v872, %v868
    %v1101 = vpack.c.b16 %v877, %v873
    %v1102 = vpack.c.b16 %v878, %v874
    %v1103 = vpack.c.b16 %v879, %v875
    %v1104 = vpack.c.b16 %v880, %v876
    %v1105 = vpack.c.b16 %v885, %v881
    %v1106 = vpack.c.b16 %v886, %v882
    %v1107 = vpack.c.b16 %v887, %v883
    %v1108 = vpack.c.b16 %v888, %v884
    %v1109 = vpack.c.b16 %v893, %v889
    %v1110 = vpack.c.b16 %v894, %v890
    %v1111 = vpack.c.b16 %v895, %v891
    %v1112 = vpack.c.b16 %v896, %v892
    %v1113 = vpack.c.b16 %v901, %v897
    %v1114 = vpack.c.b16 %v902, %v898
    %v1115 = vpack.c.b16 %v903, %v899
    %v1116 = vpack.c.b16 %v904, %v900
    %v1117 = vpack.c.b16 %v909, %v905
    %v1118 = vpack.c.b16 %v910, %v906
    %v1119 = vpack.c.b16 %v911, %v907
    %v1120 = vpack.c.b16 %v912, %v908
    %v1121 = vpack.c.b16 %v917, %v913
    %v1122 = vpack.c.b16 %v918, %v914
    %v1123 = vpack.c.b16 %v919, %v915
    %v1124 = vpack.c.b16 %v920, %v916
    %v1125 = vpack.c.b16 %v925, %v921
    %v1126 = vpack.c.b16 %v926, %v922
    %v1127 = vpack.c.b16 %v927, %v923
    %v1128 = vpack.c.b16 %v928, %v924
    %v1129 = vpack.c.b16 %v933, %v929
    %v1130 = vpack.c.b16 %v934, %v930
    %v1131 = vpack.c.b16 %v935, %v931
    %v1132 = vpack.c.b16 %v936, %v932
    %vm1329 = vcmask 130048
    %v1331 = vsel %vm1329, %v109, 0
    %v1334 = vsel %vm1329, %v116, 0
    %v1337 = vsel %vm1329, %v123, 0
    %v1340 = vsel %vm1329, %v130, 0
    %1342 = vmatprep.subr.bf16.mxu0 %v938
    %1343 = vmatpush1.bf16.msra.mxu0 %v937
    %1344 = vmatprep.subr.bf16.mxu0 %v942
    %1345 = vmatpush1.bf16.msra.mxu0 %v941
    %1346 = vmatprep.subr.bf16.mxu0 %v946
    %1347 = vmatpush1.bf16.msra.mxu0 %v945
    %1348 = vmatprep.subr.bf16.mxu0 %v950
    %1349 = vmatpush1.bf16.msra.mxu0 %v949
    %1350 = vmatprep.subr.bf16.mxu0 %v954
    %1351 = vmatpush1.bf16.msra.mxu0 %v953
    %1352 = vmatprep.subr.bf16.mxu0 %v958
    %1353 = vmatpush1.bf16.msra.mxu0 %v957
    %1354 = vmatprep.subr.bf16.mxu0 %v962
    %1355 = vmatpush1.bf16.msra.mxu0 %v961
    %1356 = vmatprep.subr.bf16.mxu0 %v966
    %1357 = vmatpush1.bf16.msra.mxu0 %v965
    %1358 = vmatprep.subr.bf16.mxu0 %v970
    %1359 = vmatpush1.bf16.msra.mxu0 %v969
    %1360 = vmatprep.subr.bf16.mxu0 %v974
    %1361 = vmatpush1.bf16.msra.mxu0 %v973
    %1362 = vmatprep.subr.bf16.mxu0 %v978
    %1363 = vmatpush1.bf16.msra.mxu0 %v977
    %1364 = vmatprep.subr.bf16.mxu0 %v982
    %1365 = vmatpush1.bf16.msra.mxu0 %v981
    %1366 = vmatprep.subr.bf16.mxu0 %v986
    %1367 = vmatpush1.bf16.msra.mxu0 %v985
    %1368 = vmatprep.subr.bf16.mxu0 %v990
    %1369 = vmatpush1.bf16.msra.mxu0 %v989
    %1370 = vmatprep.subr.bf16.mxu0 %v994
    %1371 = vmatpush1.bf16.msra.mxu0 %v993
    %1372 = vmatprep.subr.bf16.mxu0 %v998
    %1373 = vmatpush1.bf16.msra.mxu0 %v997
    %1374 = vmatprep.mubr.bf16.mxu0 %v104
    %1375 = vmatmul.mubr.bf16.gmra.mrb[0].mxu0 %v103
    %v1376 = vpop.f32.mrb[0].mxu0
    %v1377 = vadd.f32 %v332, %v1376
    %v1378 = vpop.f32.mrb[0].mxu0
    %v1379 = vadd.f32 %v336, %v1378
    %v1380 = vpop.f32.mrb[0].mxu0
    %v1381 = vadd.f32 %v332, %v1380
    %v1382 = vpop.f32.mrb[0].mxu0
    %v1383 = vadd.f32 %v336, %v1382
    %1384 = vmatprep.mubr.bf16.mxu0 %v111
    %1385 = vmatmul.mubr.bf16.gmra.mrb[0].mxu0 %v110
    %v1386 = vpop.f32.mrb[0].mxu0
    %v1387 = vadd.f32 %v332, %v1386
    %v1388 = vpop.f32.mrb[0].mxu0
    %v1389 = vadd.f32 %v336, %v1388
    %v1390 = vpop.f32.mrb[0].mxu0
    %v1391 = vadd.f32 %v332, %v1390
    %v1392 = vpop.f32.mrb[0].mxu0
    %v1393 = vadd.f32 %v336, %v1392
    %1394 = vmatprep.mubr.bf16.mxu0 %v118
    %1395 = vmatmul.mubr.bf16.gmra.mrb[0].mxu0 %v117
    %v1396 = vpop.f32.mrb[0].mxu0
    %v1397 = vadd.f32 %v332, %v1396
    %v1398 = vpop.f32.mrb[0].mxu0
    %v1399 = vadd.f32 %v336, %v1398
    %v1400 = vpop.f32.mrb[0].mxu0
    %v1401 = vadd.f32 %v332, %v1400
    %v1402 = vpop.f32.mrb[0].mxu0
    %v1403 = vadd.f32 %v336, %v1402
    %1404 = vmatprep.mubr.bf16.mxu0 %v125
    %1405 = vmatmul.mubr.bf16.gmra.mrb[0].mxu0 %v124
    %v1406 = vpop.f32.mrb[0].mxu0
    %v1407 = vadd.f32 %v332, %v1406
    %v1408 = vpop.f32.mrb[0].mxu0
    %v1409 = vadd.f32 %v336, %v1408
    %v1410 = vpop.f32.mrb[0].mxu0
    %v1411 = vadd.f32 %v332, %v1410
    %v1412 = vpop.f32.mrb[0].mxu0
    %v1413 = vadd.f32 %v336, %v1412
    %1414 = vdwg.mxu0
    %1415 = vmatprep.subr.bf16.mxu0 %v1002
    %1416 = vmatpush1.bf16.msra.mxu0 %v1001
    %1417 = vmatprep.subr.bf16.mxu0 %v1006
    %1418 = vmatpush1.bf16.msra.mxu0 %v1005
    %1419 = vmatprep.subr.bf16.mxu0 %v1010
    %1420 = vmatpush1.bf16.msra.mxu0 %v1009
    %1421 = vmatprep.subr.bf16.mxu0 %v1014
    %1422 = vmatpush1.bf16.msra.mxu0 %v1013
    %1423 = vmatprep.subr.bf16.mxu0 %v1018
    %1424 = vmatpush1.bf16.msra.mxu0 %v1017
    %1425 = vmatprep.subr.bf16.mxu0 %v1022
    %1426 = vmatpush1.bf16.msra.mxu0 %v1021
    %1427 = vmatprep.subr.bf16.mxu0 %v1026
    %1428 = vmatpush1.bf16.msra.mxu0 %v1025
    %1429 = vmatprep.subr.bf16.mxu0 %v1030
    %1430 = vmatpush1.bf16.msra.mxu0 %v1029
    %1431 = vmatprep.subr.bf16.mxu0 %v1034
    %1432 = vmatpush1.bf16.msra.mxu0 %v1033
    %1433 = vmatprep.subr.bf16.mxu0 %v1038
    %1434 = vmatpush1.bf16.msra.mxu0 %v1037
    %1435 = vmatprep.subr.bf16.mxu0 %v1042
    %1436 = vmatpush1.bf16.msra.mxu0 %v1041
    %1437 = vmatprep.subr.bf16.mxu0 %v1046
    %1438 = vmatpush1.bf16.msra.mxu0 %v1045
    %1439 = vmatprep.subr.bf16.mxu0 %v1050
    %1440 = vmatpush1.bf16.msra.mxu0 %v1049
    %1441 = vmatprep.subr.bf16.mxu0 %v1054
    %1442 = vmatpush1.bf16.msra.mxu0 %v1053
    %1443 = vmatprep.subr.bf16.mxu0 %v1058
    %1444 = vmatpush1.bf16.msra.mxu0 %v1057
    %1445 = vmatprep.subr.bf16.mxu0 %v1062
    %1446 = vmatpush1.bf16.msra.mxu0 %v1061
    %1447 = vmatprep.mubr.bf16.mxu0 %v106
    %1448 = vmatmul.mubr.bf16.gmra.mrb[0].mxu0 %v105
    %v1449 = vpop.f32.mrb[0].mxu0
    %v1450 = vadd.f32 %v1377, %v1449
    %v1451 = vpop.f32.mrb[0].mxu0
    %v1452 = vadd.f32 %v1379, %v1451
    %v1453 = vpop.f32.mrb[0].mxu0
    %v1454 = vadd.f32 %v1381, %v1453
    %v1455 = vpop.f32.mrb[0].mxu0
    %v1456 = vadd.f32 %v1383, %v1455
    %1457 = vmatprep.mubr.bf16.mxu0 %v113
    %1458 = vmatmul.mubr.bf16.gmra.mrb[0].mxu0 %v112
    %v1459 = vpop.f32.mrb[0].mxu0
    %v1460 = vadd.f32 %v1387, %v1459
    %v1461 = vpop.f32.mrb[0].mxu0
    %v1462 = vadd.f32 %v1389, %v1461
    %v1463 = vpop.f32.mrb[0].mxu0
    %v1464 = vadd.f32 %v1391, %v1463
    %v1465 = vpop.f32.mrb[0].mxu0
    %v1466 = vadd.f32 %v1393, %v1465
    %1467 = vmatprep.mubr.bf16.mxu0 %v120
    %1468 = vmatmul.mubr.bf16.gmra.mrb[0].mxu0 %v119
    %v1469 = vpop.f32.mrb[0].mxu0
    %v1470 = vadd.f32 %v1397, %v1469
    %v1471 = vpop.f32.mrb[0].mxu0
    %v1472 = vadd.f32 %v1399, %v1471
    %v1473 = vpop.f32.mrb[0].mxu0
    %v1474 = vadd.f32 %v1401, %v1473
    %v1475 = vpop.f32.mrb[0].mxu0
    %v1476 = vadd.f32 %v1403, %v1475
    %1477 = vmatprep.mubr.bf16.mxu0 %v127
    %1478 = vmatmul.mubr.bf16.gmra.mrb[0].mxu0 %v126
    %v1479 = vpop.f32.mrb[0].mxu0
    %v1480 = vadd.f32 %v1407, %v1479
    %v1481 = vpop.f32.mrb[0].mxu0
    %v1482 = vadd.f32 %v1409, %v1481
    %v1483 = vpop.f32.mrb[0].mxu0
    %v1484 = vadd.f32 %v1411, %v1483
    %v1485 = vpop.f32.mrb[0].mxu0
    %v1486 = vadd.f32 %v1413, %v1485
    %1487 = vdwg.mxu0
    %1488 = vmatprep.subr.bf16.mxu0 %v1066
    %1489 = vmatpush1.bf16.msra.mxu0 %v1065
    %1490 = vmatprep.subr.bf16.mxu0 %v1070
    %1491 = vmatpush1.bf16.msra.mxu0 %v1069
    %1492 = vmatprep.subr.bf16.mxu0 %v1074
    %1493 = vmatpush1.bf16.msra.mxu0 %v1073
    %1494 = vmatprep.subr.bf16.mxu0 %v1078
    %1495 = vmatpush1.bf16.msra.mxu0 %v1077
    %1496 = vmatprep.subr.bf16.mxu0 %v1082
    %1497 = vmatpush1.bf16.msra.mxu0 %v1081
    %1498 = vmatprep.subr.bf16.mxu0 %v1086
    %1499 = vmatpush1.bf16.msra.mxu0 %v1085
    %1500 = vmatprep.subr.bf16.mxu0 %v1090
    %1501 = vmatpush1.bf16.msra.mxu0 %v1089
    %1502 = vmatprep.subr.bf16.mxu0 %v1094
    %1503 = vmatpush1.bf16.msra.mxu0 %v1093
    %1504 = vmatprep.subr.bf16.mxu0 %v1098
    %1505 = vmatpush1.bf16.msra.mxu0 %v1097
    %1506 = vmatprep.subr.bf16.mxu0 %v1102
    %1507 = vmatpush1.bf16.msra.mxu0 %v1101
    %1508 = vmatprep.subr.bf16.mxu0 %v1106
    %1509 = vmatpush1.bf16.msra.mxu0 %v1105
    %1510 = vmatprep.subr.bf16.mxu0 %v1110
    %1511 = vmatpush1.bf16.msra.mxu0 %v1109
    %1512 = vmatprep.subr.bf16.mxu0 %v1114
    %1513 = vmatpush1.bf16.msra.mxu0 %v1113
    %1514 = vmatprep.subr.bf16.mxu0 %v1118
    %1515 = vmatpush1.bf16.msra.mxu0 %v1117
    %1516 = vmatprep.subr.bf16.mxu0 %v1122
    %1517 = vmatpush1.bf16.msra.mxu0 %v1121
    %1518 = vmatprep.subr.bf16.mxu0 %v1126
    %1519 = vmatpush1.bf16.msra.mxu0 %v1125
    %1520 = vmatprep.mubr.bf16.mxu0 %v108
    %1521 = vmatmul.mubr.bf16.gmra.mrb[0].mxu0 %v107
    %v1522 = vpop.f32.mrb[0].mxu0
    %v1523 = vadd.f32 %v1450, %v1522
    %v1524 = vpop.f32.mrb[0].mxu0
    %v1525 = vadd.f32 %v1452, %v1524
    %v1526 = vpop.f32.mrb[0].mxu0
    %v1527 = vadd.f32 %v1454, %v1526
    %v1528 = vpop.f32.mrb[0].mxu0
    %v1529 = vadd.f32 %v1456, %v1528
    %1530 = vmatprep.mubr.bf16.mxu0 %v115
    %1531 = vmatmul.mubr.bf16.gmra.mrb[0].mxu0 %v114
    %v1532 = vpop.f32.mrb[0].mxu0
    %v1533 = vadd.f32 %v1460, %v1532
    %v1534 = vpop.f32.mrb[0].mxu0
    %v1535 = vadd.f32 %v1462, %v1534
    %v1536 = vpop.f32.mrb[0].mxu0
    %v1537 = vadd.f32 %v1464, %v1536
    %v1538 = vpop.f32.mrb[0].mxu0
    %v1539 = vadd.f32 %v1466, %v1538
    %1540 = vmatprep.mubr.bf16.mxu0 %v122
    %1541 = vmatmul.mubr.bf16.gmra.mrb[0].mxu0 %v121
    %v1542 = vpop.f32.mrb[0].mxu0
    %v1543 = vadd.f32 %v1470, %v1542
    %v1544 = vpop.f32.mrb[0].mxu0
    %v1545 = vadd.f32 %v1472, %v1544
    %v1546 = vpop.f32.mrb[0].mxu0
    %v1547 = vadd.f32 %v1474, %v1546
    %v1548 = vpop.f32.mrb[0].mxu0
    %v1549 = vadd.f32 %v1476, %v1548
    %1550 = vmatprep.mubr.bf16.mxu0 %v129
    %1551 = vmatmul.mubr.bf16.gmra.mrb[0].mxu0 %v128
    %v1552 = vpop.f32.mrb[0].mxu0
    %v1553 = vadd.f32 %v1480, %v1552
    %v1554 = vpop.f32.mrb[0].mxu0
    %v1555 = vadd.f32 %v1482, %v1554
    %v1556 = vpop.f32.mrb[0].mxu0
    %v1557 = vadd.f32 %v1484, %v1556
    %v1558 = vpop.f32.mrb[0].mxu0
    %v1559 = vadd.f32 %v1486, %v1558
    %1560 = vdwg.mxu0
    %1561 = vmatprep.subr.bf16.mxu0 %v1130
    %1562 = vmatpush1.bf16.msra.mxu0 %v1129
    %1563 = vmatprep.subr.bf16.mxu0 0
    %1564 = vmatpush1.bf16.msra.mxu0 0
    %1565 = vmatprep.subr.bf16.mxu0 0
    %1566 = vmatpush1.bf16.msra.mxu0 0
    %1567 = vmatprep.subr.bf16.mxu0 0
    %1568 = vmatpush1.bf16.msra.mxu0 0
    %1569 = vmatprep.subr.bf16.mxu0 0
    %1570 = vmatpush1.bf16.msra.mxu0 0
    %1571 = vmatprep.subr.bf16.mxu0 0
    %1572 = vmatpush1.bf16.msra.mxu0 0
    %1573 = vmatprep.subr.bf16.mxu0 0
    %1574 = vmatpush1.bf16.msra.mxu0 0
    %1575 = vmatprep.subr.bf16.mxu0 0
    %1576 = vmatpush1.bf16.msra.mxu0 0
    %1577 = vmatprep.subr.bf16.mxu0 0
    %1578 = vmatpush1.bf16.msra.mxu0 0
    %1579 = vmatprep.subr.bf16.mxu0 0
    %1580 = vmatpush1.bf16.msra.mxu0 0
    %1581 = vmatprep.subr.bf16.mxu0 0
    %1582 = vmatpush1.bf16.msra.mxu0 0
    %1583 = vmatprep.subr.bf16.mxu0 0
    %1584 = vmatpush1.bf16.msra.mxu0 0
    %1585 = vmatprep.subr.bf16.mxu0 0
    %1586 = vmatpush1.bf16.msra.mxu0 0
    %1587 = vmatprep.subr.bf16.mxu0 0
    %1588 = vmatpush1.bf16.msra.mxu0 0
    %1589 = vmatprep.subr.bf16.mxu0 0
    %1590 = vmatpush1.bf16.msra.mxu0 0
    %1591 = vmatprep.subr.bf16.mxu0 0
    %1592 = vmatpush1.bf16.msra.mxu0 0
    %1593 = vmatprep.mubr.bf16.mxu0 0
    %1594 = vmatmul.mubr.bf16.gmra.mrb[0].mxu0 %v1331
    %v1595 = vpop.f32.mrb[0].mxu0
    %v1596 = vadd.f32 %v1523, %v1595
    %v1597 = vpop.f32.mrb[0].mxu0
    %v1598 = vadd.f32 %v1525, %v1597
    %v1599 = vpop.f32.mrb[0].mxu0
    %v1600 = vadd.f32 %v1527, %v1599
    %v1601 = vpop.f32.mrb[0].mxu0
    %v1602 = vadd.f32 %v1529, %v1601
    %1603 = vmatprep.mubr.bf16.mxu0 0
    %1604 = vmatmul.mubr.bf16.gmra.mrb[0].mxu0 %v1334
    %v1605 = vpop.f32.mrb[0].mxu0
    %v1606 = vadd.f32 %v1533, %v1605
    %v1607 = vpop.f32.mrb[0].mxu0
    %v1608 = vadd.f32 %v1535, %v1607
    %v1609 = vpop.f32.mrb[0].mxu0
    %v1610 = vadd.f32 %v1537, %v1609
    %v1611 = vpop.f32.mrb[0].mxu0
    %v1612 = vadd.f32 %v1539, %v1611
    %1613 = vmatprep.mubr.bf16.mxu0 0
    %1614 = vmatmul.mubr.bf16.gmra.mrb[0].mxu0 %v1337
    %v1615 = vpop.f32.mrb[0].mxu0
    %v1616 = vadd.f32 %v1543, %v1615
    %v1617 = vpop.f32.mrb[0].mxu0
    %v1618 = vadd.f32 %v1545, %v1617
    %v1619 = vpop.f32.mrb[0].mxu0
    %v1620 = vadd.f32 %v1547, %v1619
    %v1621 = vpop.f32.mrb[0].mxu0
    %v1622 = vadd.f32 %v1549, %v1621
    %1623 = vmatprep.mubr.bf16.mxu0 0
    %1624 = vmatmul.mubr.bf16.gmra.mrb[0].mxu0 %v1340
    %v1625 = vpop.f32.mrb[0].mxu0
    %v1626 = vadd.f32 %v1553, %v1625
    %v1627 = vpop.f32.mrb[0].mxu0
    %v1628 = vadd.f32 %v1555, %v1627
    %v1629 = vpop.f32.mrb[0].mxu0
    %v1630 = vadd.f32 %v1557, %v1629
    %v1631 = vpop.f32.mrb[0].mxu0
    %v1632 = vadd.f32 %v1559, %v1631
    %1633 = vdwg.mxu0
    %1634 = vmatprep.subr.bf16.mxu0 %v940
    %1635 = vmatpush1.bf16.msra.mxu0 %v939
    %1636 = vmatprep.subr.bf16.mxu0 %v944
    %1637 = vmatpush1.bf16.msra.mxu0 %v943
    %1638 = vmatprep.subr.bf16.mxu0 %v948
    %1639 = vmatpush1.bf16.msra.mxu0 %v947
    %1640 = vmatprep.subr.bf16.mxu0 %v952
    %1641 = vmatpush1.bf16.msra.mxu0 %v951
    %1642 = vmatprep.subr.bf16.mxu0 %v956
    %1643 = vmatpush1.bf16.msra.mxu0 %v955
    %1644 = vmatprep.subr.bf16.mxu0 %v960
    %1645 = vmatpush1.bf16.msra.mxu0 %v959
    %1646 = vmatprep.subr.bf16.mxu0 %v964
    %1647 = vmatpush1.bf16.msra.mxu0 %v963
    %1648 = vmatprep.subr.bf16.mxu0 %v968
    %1649 = vmatpush1.bf16.msra.mxu0 %v967
    %1650 = vmatprep.subr.bf16.mxu0 %v972
    %1651 = vmatpush1.bf16.msra.mxu0 %v971
    %1652 = vmatprep.subr.bf16.mxu0 %v976
    %1653 = vmatpush1.bf16.msra.mxu0 %v975
    %1654 = vmatprep.subr.bf16.mxu0 %v980
    %1655 = vmatpush1.bf16.msra.mxu0 %v979
    %1656 = vmatprep.subr.bf16.mxu0 %v984
    %1657 = vmatpush1.bf16.msra.mxu0 %v983
    %1658 = vmatprep.subr.bf16.mxu0 %v988
    %1659 = vmatpush1.bf16.msra.mxu0 %v987
    %1660 = vmatprep.subr.bf16.mxu0 %v992
    %1661 = vmatpush1.bf16.msra.mxu0 %v991
    %1662 = vmatprep.subr.bf16.mxu0 %v996
    %1663 = vmatpush1.bf16.msra.mxu0 %v995
    %1664 = vmatprep.subr.bf16.mxu0 %v1000
    %1665 = vmatpush1.bf16.msra.mxu0 %v999
    %1666 = vmatprep.mubr.bf16.mxu0 %v104
    %1667 = vmatmul.mubr.bf16.gmra.mrb[0].mxu0 %v103
    %v1668 = vpop.f32.mrb[0].mxu0
    %v1669 = vadd.f32 %v340, %v1668
    %v1670 = vpop.f32.mrb[0].mxu0
    %v1671 = vadd.f32 %v344, %v1670
    %v1672 = vpop.f32.mrb[0].mxu0
    %v1673 = vadd.f32 %v340, %v1672
    %v1674 = vpop.f32.mrb[0].mxu0
    %v1675 = vadd.f32 %v344, %v1674
    %1676 = vmatprep.mubr.bf16.mxu0 %v111
    %1677 = vmatmul.mubr.bf16.gmra.mrb[0].mxu0 %v110
    %v1678 = vpop.f32.mrb[0].mxu0
    %v1679 = vadd.f32 %v340, %v1678
    %v1680 = vpop.f32.mrb[0].mxu0
    %v1681 = vadd.f32 %v344, %v1680
    %v1682 = vpop.f32.mrb[0].mxu0
    %v1683 = vadd.f32 %v340, %v1682
    %v1684 = vpop.f32.mrb[0].mxu0
    %v1685 = vadd.f32 %v344, %v1684
    %1686 = vmatprep.mubr.bf16.mxu0 %v118
    %1687 = vmatmul.mubr.bf16.gmra.mrb[0].mxu0 %v117
    %v1688 = vpop.f32.mrb[0].mxu0
    %v1689 = vadd.f32 %v340, %v1688
    %v1690 = vpop.f32.mrb[0].mxu0
    %v1691 = vadd.f32 %v344, %v1690
    %v1692 = vpop.f32.mrb[0].mxu0
    %v1693 = vadd.f32 %v340, %v1692
    %v1694 = vpop.f32.mrb[0].mxu0
    %v1695 = vadd.f32 %v344, %v1694
    %1696 = vmatprep.mubr.bf16.mxu0 %v125
    %1697 = vmatmul.mubr.bf16.gmra.mrb[0].mxu0 %v124
    %v1698 = vpop.f32.mrb[0].mxu0
    %v1699 = vadd.f32 %v340, %v1698
    %v1700 = vpop.f32.mrb[0].mxu0
    %v1701 = vadd.f32 %v344, %v1700
    %v1702 = vpop.f32.mrb[0].mxu0
    %v1703 = vadd.f32 %v340, %v1702
    %v1704 = vpop.f32.mrb[0].mxu0
    %v1705 = vadd.f32 %v344, %v1704
    %1706 = vdwg.mxu0
    %1707 = vmatprep.subr.bf16.mxu0 %v1004
    %1708 = vmatpush1.bf16.msra.mxu0 %v1003
    %1709 = vmatprep.subr.bf16.mxu0 %v1008
    %1710 = vmatpush1.bf16.msra.mxu0 %v1007
    %1711 = vmatprep.subr.bf16.mxu0 %v1012
    %1712 = vmatpush1.bf16.msra.mxu0 %v1011
    %1713 = vmatprep.subr.bf16.mxu0 %v1016
    %1714 = vmatpush1.bf16.msra.mxu0 %v1015
    %1715 = vmatprep.subr.bf16.mxu0 %v1020
    %1716 = vmatpush1.bf16.msra.mxu0 %v1019
    %1717 = vmatprep.subr.bf16.mxu0 %v1024
    %1718 = vmatpush1.bf16.msra.mxu0 %v1023
    %1719 = vmatprep.subr.bf16.mxu0 %v1028
    %1720 = vmatpush1.bf16.msra.mxu0 %v1027
    %1721 = vmatprep.subr.bf16.mxu0 %v1032
    %1722 = vmatpush1.bf16.msra.mxu0 %v1031
    %1723 = vmatprep.subr.bf16.mxu0 %v1036
    %1724 = vmatpush1.bf16.msra.mxu0 %v1035
    %1725 = vmatprep.subr.bf16.mxu0 %v1040
    %1726 = vmatpush1.bf16.msra.mxu0 %v1039
    %1727 = vmatprep.subr.bf16.mxu0 %v1044
    %1728 = vmatpush1.bf16.msra.mxu0 %v1043
    %1729 = vmatprep.subr.bf16.mxu0 %v1048
    %1730 = vmatpush1.bf16.msra.mxu0 %v1047
    %1731 = vmatprep.subr.bf16.mxu0 %v1052
    %1732 = vmatpush1.bf16.msra.mxu0 %v1051
    %1733 = vmatprep.subr.bf16.mxu0 %v1056
    %1734 = vmatpush1.bf16.msra.mxu0 %v1055
    %1735 = vmatprep.subr.bf16.mxu0 %v1060
    %1736 = vmatpush1.bf16.msra.mxu0 %v1059
    %1737 = vmatprep.subr.bf16.mxu0 %v1064
    %1738 = vmatpush1.bf16.msra.mxu0 %v1063
    %1739 = vmatprep.mubr.bf16.mxu0 %v106
    %1740 = vmatmul.mubr.bf16.gmra.mrb[0].mxu0 %v105
    %v1741 = vpop.f32.mrb[0].mxu0
    %v1742 = vadd.f32 %v1669, %v1741
    %v1743 = vpop.f32.mrb[0].mxu0
    %v1744 = vadd.f32 %v1671, %v1743
    %v1745 = vpop.f32.mrb[0].mxu0
    %v1746 = vadd.f32 %v1673, %v1745
    %v1747 = vpop.f32.mrb[0].mxu0
    %v1748 = vadd.f32 %v1675, %v1747
    %1749 = vmatprep.mubr.bf16.mxu0 %v113
    %1750 = vmatmul.mubr.bf16.gmra.mrb[0].mxu0 %v112
    %v1751 = vpop.f32.mrb[0].mxu0
    %v1752 = vadd.f32 %v1679, %v1751
    %v1753 = vpop.f32.mrb[0].mxu0
    %v1754 = vadd.f32 %v1681, %v1753
    %v1755 = vpop.f32.mrb[0].mxu0
    %v1756 = vadd.f32 %v1683, %v1755
    %v1757 = vpop.f32.mrb[0].mxu0
    %v1758 = vadd.f32 %v1685, %v1757
    %1759 = vmatprep.mubr.bf16.mxu0 %v120
    %1760 = vmatmul.mubr.bf16.gmra.mrb[0].mxu0 %v119
    %v1761 = vpop.f32.mrb[0].mxu0
    %v1762 = vadd.f32 %v1689, %v1761
    %v1763 = vpop.f32.mrb[0].mxu0
    %v1764 = vadd.f32 %v1691, %v1763
    %v1765 = vpop.f32.mrb[0].mxu0
    %v1766 = vadd.f32 %v1693, %v1765
    %v1767 = vpop.f32.mrb[0].mxu0
    %v1768 = vadd.f32 %v1695, %v1767
    %1769 = vmatprep.mubr.bf16.mxu0 %v127
    %1770 = vmatmul.mubr.bf16.gmra.mrb[0].mxu0 %v126
    %v1771 = vpop.f32.mrb[0].mxu0
    %v1772 = vadd.f32 %v1699, %v1771
    %v1773 = vpop.f32.mrb[0].mxu0
    %v1774 = vadd.f32 %v1701, %v1773
    %v1775 = vpop.f32.mrb[0].mxu0
    %v1776 = vadd.f32 %v1703, %v1775
    %v1777 = vpop.f32.mrb[0].mxu0
    %v1778 = vadd.f32 %v1705, %v1777
    %1779 = vdwg.mxu0
    %1780 = vmatprep.subr.bf16.mxu0 %v1068
    %1781 = vmatpush1.bf16.msra.mxu0 %v1067
    %1782 = vmatprep.subr.bf16.mxu0 %v1072
    %1783 = vmatpush1.bf16.msra.mxu0 %v1071
    %1784 = vmatprep.subr.bf16.mxu0 %v1076
    %1785 = vmatpush1.bf16.msra.mxu0 %v1075
    %1786 = vmatprep.subr.bf16.mxu0 %v1080
    %1787 = vmatpush1.bf16.msra.mxu0 %v1079
    %1788 = vmatprep.subr.bf16.mxu0 %v1084
    %1789 = vmatpush1.bf16.msra.mxu0 %v1083
    %1790 = vmatprep.subr.bf16.mxu0 %v1088
    %1791 = vmatpush1.bf16.msra.mxu0 %v1087
    %1792 = vmatprep.subr.bf16.mxu0 %v1092
    %1793 = vmatpush1.bf16.msra.mxu0 %v1091
    %1794 = vmatprep.subr.bf16.mxu0 %v1096
    %1795 = vmatpush1.bf16.msra.mxu0 %v1095
    %1796 = vmatprep.subr.bf16.mxu0 %v1100
    %1797 = vmatpush1.bf16.msra.mxu0 %v1099
    %1798 = vmatprep.subr.bf16.mxu0 %v1104
    %1799 = vmatpush1.bf16.msra.mxu0 %v1103
    %1800 = vmatprep.subr.bf16.mxu0 %v1108
    %1801 = vmatpush1.bf16.msra.mxu0 %v1107
    %1802 = vmatprep.subr.bf16.mxu0 %v1112
    %1803 = vmatpush1.bf16.msra.mxu0 %v1111
    %1804 = vmatprep.subr.bf16.mxu0 %v1116
    %1805 = vmatpush1.bf16.msra.mxu0 %v1115
    %1806 = vmatprep.subr.bf16.mxu0 %v1120
    %1807 = vmatpush1.bf16.msra.mxu0 %v1119
    %1808 = vmatprep.subr.bf16.mxu0 %v1124
    %1809 = vmatpush1.bf16.msra.mxu0 %v1123
    %1810 = vmatprep.subr.bf16.mxu0 %v1128
    %1811 = vmatpush1.bf16.msra.mxu0 %v1127
    %1812 = vmatprep.mubr.bf16.mxu0 %v108
    %1813 = vmatmul.mubr.bf16.gmra.mrb[0].mxu0 %v107
    %v1814 = vpop.f32.mrb[0].mxu0
    %v1815 = vadd.f32 %v1742, %v1814
    %v1816 = vpop.f32.mrb[0].mxu0
    %v1817 = vadd.f32 %v1744, %v1816
    %v1818 = vpop.f32.mrb[0].mxu0
    %v1819 = vadd.f32 %v1746, %v1818
    %v1820 = vpop.f32.mrb[0].mxu0
    %v1821 = vadd.f32 %v1748, %v1820
    %1822 = vmatprep.mubr.bf16.mxu0 %v115
    %1823 = vmatmul.mubr.bf16.gmra.mrb[0].mxu0 %v114
    %v1824 = vpop.f32.mrb[0].mxu0
    %v1825 = vadd.f32 %v1752, %v1824
    %v1826 = vpop.f32.mrb[0].mxu0
    %v1827 = vadd.f32 %v1754, %v1826
    %v1828 = vpop.f32.mrb[0].mxu0
    %v1829 = vadd.f32 %v1756, %v1828
    %v1830 = vpop.f32.mrb[0].mxu0
    %v1831 = vadd.f32 %v1758, %v1830
    %1832 = vmatprep.mubr.bf16.mxu0 %v122
    %1833 = vmatmul.mubr.bf16.gmra.mrb[0].mxu0 %v121
    %v1834 = vpop.f32.mrb[0].mxu0
    %v1835 = vadd.f32 %v1762, %v1834
    %v1836 = vpop.f32.mrb[0].mxu0
    %v1837 = vadd.f32 %v1764, %v1836
    %v1838 = vpop.f32.mrb[0].mxu0
    %v1839 = vadd.f32 %v1766, %v1838
    %v1840 = vpop.f32.mrb[0].mxu0
    %v1841 = vadd.f32 %v1768, %v1840
    %1842 = vmatprep.mubr.bf16.mxu0 %v129
    %1843 = vmatmul.mubr.bf16.gmra.mrb[0].mxu0 %v128
    %v1844 = vpop.f32.mrb[0].mxu0
    %v1845 = vadd.f32 %v1772, %v1844
    %v1846 = vpop.f32.mrb[0].mxu0
    %v1847 = vadd.f32 %v1774, %v1846
    %v1848 = vpop.f32.mrb[0].mxu0
    %v1849 = vadd.f32 %v1776, %v1848
    %v1850 = vpop.f32.mrb[0].mxu0
    %v1851 = vadd.f32 %v1778, %v1850
    %1852 = vdwg.mxu0
    %1853 = vmatprep.subr.bf16.mxu0 %v1132
    %1854 = vmatpush1.bf16.msra.mxu0 %v1131
    %1855 = vmatprep.subr.bf16.mxu0 0
    %1856 = vmatpush1.bf16.msra.mxu0 0
    %1857 = vmatprep.subr.bf16.mxu0 0
    %1858 = vmatpush1.bf16.msra.mxu0 0
    %1859 = vmatprep.subr.bf16.mxu0 0
    %1860 = vmatpush1.bf16.msra.mxu0 0
    %1861 = vmatprep.subr.bf16.mxu0 0
    %1862 = vmatpush1.bf16.msra.mxu0 0
    %1863 = vmatprep.subr.bf16.mxu0 0
    %1864 = vmatpush1.bf16.msra.mxu0 0
    %1865 = vmatprep.subr.bf16.mxu0 0
    %1866 = vmatpush1.bf16.msra.mxu0 0
    %1867 = vmatprep.subr.bf16.mxu0 0
    %1868 = vmatpush1.bf16.msra.mxu0 0
    %1869 = vmatprep.subr.bf16.mxu0 0
    %1870 = vmatpush1.bf16.msra.mxu0 0
    %1871 = vmatprep.subr.bf16.mxu0 0
    %1872 = vmatpush1.bf16.msra.mxu0 0
    %1873 = vmatprep.subr.bf16.mxu0 0
    %1874 = vmatpush1.bf16.msra.mxu0 0
    %1875 = vmatprep.subr.bf16.mxu0 0
    %1876 = vmatpush1.bf16.msra.mxu0 0
    %1877 = vmatprep.subr.bf16.mxu0 0
    %1878 = vmatpush1.bf16.msra.mxu0 0
    %1879 = vmatprep.subr.bf16.mxu0 0
    %1880 = vmatpush1.bf16.msra.mxu0 0
    %1881 = vmatprep.subr.bf16.mxu0 0
    %1882 = vmatpush1.bf16.msra.mxu0 0
    %1883 = vmatprep.subr.bf16.mxu0 0
    %1884 = vmatpush1.bf16.msra.mxu0 0
    %1885 = vmatprep.mubr.bf16.mxu0 0
    %1886 = vmatmul.mubr.bf16.gmra.mrb[0].mxu0 %v1331
    %v1887 = vpop.f32.mrb[0].mxu0
    %v1888 = vadd.f32 %v1815, %v1887
    %v1889 = vpop.f32.mrb[0].mxu0
    %v1890 = vadd.f32 %v1817, %v1889
    %v1891 = vpop.f32.mrb[0].mxu0
    %v1892 = vadd.f32 %v1819, %v1891
    %v1893 = vpop.f32.mrb[0].mxu0
    %v1894 = vadd.f32 %v1821, %v1893
    %1895 = vmatprep.mubr.bf16.mxu0 0
    %1896 = vmatmul.mubr.bf16.gmra.mrb[0].mxu0 %v1334
    %v1897 = vpop.f32.mrb[0].mxu0
    %v1898 = vadd.f32 %v1825, %v1897
    %v1899 = vpop.f32.mrb[0].mxu0
    %v1900 = vadd.f32 %v1827, %v1899
    %v1901 = vpop.f32.mrb[0].mxu0
    %v1902 = vadd.f32 %v1829, %v1901
    %v1903 = vpop.f32.mrb[0].mxu0
    %v1904 = vadd.f32 %v1831, %v1903
    %1905 = vmatprep.mubr.bf16.mxu0 0
    %1906 = vmatmul.mubr.bf16.gmra.mrb[0].mxu0 %v1337
    %v1907 = vpop.f32.mrb[0].mxu0
    %v1908 = vadd.f32 %v1835, %v1907
    %v1909 = vpop.f32.mrb[0].mxu0
    %v1910 = vadd.f32 %v1837, %v1909
    %v1911 = vpop.f32.mrb[0].mxu0
    %v1912 = vadd.f32 %v1839, %v1911
    %v1913 = vpop.f32.mrb[0].mxu0
    %v1914 = vadd.f32 %v1841, %v1913
    %1915 = vmatprep.mubr.bf16.mxu0 0
    %1916 = vmatmul.mubr.bf16.gmra.mrb[0].mxu0 %v1340
    %v1917 = vpop.f32.mrb[0].mxu0
    %v1918 = vadd.f32 %v1845, %v1917
    %v1919 = vpop.f32.mrb[0].mxu0
    %v1920 = vadd.f32 %v1847, %v1919
    %v1921 = vpop.f32.mrb[0].mxu0
    %v1922 = vadd.f32 %v1849, %v1921
    %v1923 = vpop.f32.mrb[0].mxu0
    %v1924 = vadd.f32 %v1851, %v1923
    %1925 = vdwg.mxu0
    %v1926 = vmax.f32 %v1596, 0.0
    %v1927 = vmax.f32 %v1598, 0.0
    %v1928 = vmax.f32 %v1888, 0.0
    %v1929 = vmax.f32 %v1890, 0.0
    %v1930 = vmax.f32 %v1600, 0.0
    %v1931 = vmax.f32 %v1602, 0.0
    %v1932 = vmax.f32 %v1892, 0.0
    %v1933 = vmax.f32 %v1894, 0.0
    %v1934 = vmax.f32 %v1606, 0.0
    %v1935 = vmax.f32 %v1608, 0.0
    %v1936 = vmax.f32 %v1898, 0.0
    %v1937 = vmax.f32 %v1900, 0.0
    %v1938 = vmax.f32 %v1610, 0.0
    %v1939 = vmax.f32 %v1612, 0.0
    %v1940 = vmax.f32 %v1902, 0.0
    %v1941 = vmax.f32 %v1904, 0.0
    %v1942 = vmax.f32 %v1616, 0.0
    %v1943 = vmax.f32 %v1618, 0.0
    %v1944 = vmax.f32 %v1908, 0.0
    %v1945 = vmax.f32 %v1910, 0.0
    %v1946 = vmax.f32 %v1620, 0.0
    %v1947 = vmax.f32 %v1622, 0.0
    %v1948 = vmax.f32 %v1912, 0.0
    %v1949 = vmax.f32 %v1914, 0.0
    %v1950 = vmax.f32 %v1626, 0.0
    %v1951 = vmax.f32 %v1628, 0.0
    %v1952 = vmax.f32 %v1918, 0.0
    %v1953 = vmax.f32 %v1920, 0.0
    %v1954 = vmax.f32 %v1630, 0.0
    %v1955 = vmax.f32 %v1632, 0.0
    %v1956 = vmax.f32 %v1922, 0.0
    %v1957 = vmax.f32 %v1924, 0.0
    %v1958 = vpack.c.bf16 %v1930, %v1926
    %v1959 = vpack.c.bf16 %v1931, %v1927
    %v1960 = vpack.c.bf16 %v1932, %v1928
    %v1961 = vpack.c.bf16 %v1933, %v1929
    %v1962 = vpack.c.bf16 %v1938, %v1934
    %v1963 = vpack.c.bf16 %v1939, %v1935
    %v1964 = vpack.c.bf16 %v1940, %v1936
    %v1965 = vpack.c.bf16 %v1941, %v1937
    %v1966 = vpack.c.bf16 %v1946, %v1942
    %v1967 = vpack.c.bf16 %v1947, %v1943
    %v1968 = vpack.c.bf16 %v1948, %v1944
    %v1969 = vpack.c.bf16 %v1949, %v1945
    %v1970 = vpack.c.bf16 %v1954, %v1950
    %v1971 = vpack.c.bf16 %v1955, %v1951
    %v1972 = vpack.c.bf16 %v1956, %v1952
    %v1973 = vpack.c.bf16 %v1957, %v1953
    %v1974 = vld [vmem:[%s3] sm:$0xff]
    %v1975 = vld [vmem:[%s3 + $0x8] sm:$0xff]
    %v1976 = vld [vmem:[%s3 + $0x10] sm:$0xff]
    %v1977 = vld [vmem:[%s3 + $0x18] sm:$0xff]
    %v1978 = vld [vmem:[%s3 + $0x20] sm:$0xff]
    %v1979 = vld [vmem:[%s3 + $0x28] sm:$0xff]
    %v1980 = vld [vmem:[%s3 + $0x30] sm:$0xff]
    %v1981 = vld [vmem:[%s3 + $0x38] sm:$0xff]
    %v1982 = vld [vmem:[%s3 + $0x40] sm:$0xff]
    %v1983 = vld [vmem:[%s3 + $0x48] sm:$0xff]
    %v1984 = vld [vmem:[%s3 + $0x50] sm:$0xff]
    %v1985 = vld [vmem:[%s3 + $0x58] sm:$0xff]
    %v1986 = vld [vmem:[%s3 + $0x60] sm:$0xff]
    %v1987 = vld [vmem:[%s3 + $0x68] sm:$0xff]
    %v1988 = vld [vmem:[%s3 + $0x70] sm:$0xff]
    %v1989 = vld [vmem:[%s3 + $0x78] sm:$0xff]
    %v1990 = vld [vmem:[%s3 + $0x80] sm:$0xff]
    %v1991 = vld [vmem:[%s3 + $0x88] sm:$0xff]
    %v1992 = vld [vmem:[%s3 + $0x90] sm:$0xff]
    %v1993 = vld [vmem:[%s3 + $0x98] sm:$0xff]
    %v1994 = vld [vmem:[%s3 + $0xa0] sm:$0xff]
    %v1995 = vld [vmem:[%s3 + $0xa8] sm:$0xff]
    %v1996 = vld [vmem:[%s3 + $0xb0] sm:$0xff]
    %v1997 = vld [vmem:[%s3 + $0xb8] sm:$0xff]
    %v1998 = vld [vmem:[%s3 + $0xc0] sm:$0xff]
    %v1999 = vld [vmem:[%s3 + $0xc8] sm:$0xff]
    %v2000 = vld [vmem:[%s3 + $0xd0] sm:$0xff]
    %v2001 = vld [vmem:[%s3 + $0xd8] sm:$0xff]
    %v2002 = vld [vmem:[%s3 + $0xe0] sm:$0xff]
    %v2003 = vld [vmem:[%s3 + $0xe8] sm:$0xff]
    %v2004 = vld [vmem:[%s3 + $0xf0] sm:$0xff]
    %v2005 = vld [vmem:[%s3 + $0xf8] sm:$0xff]
    %v2006 = vld [vmem:[%s3 + $0x100] sm:$0xff]
    %v2007 = vld [vmem:[%s3 + $0x108] sm:$0xff]
    %v2008 = vld [vmem:[%s3 + $0x110] sm:$0xff]
    %v2009 = vld [vmem:[%s3 + $0x118] sm:$0xff]
    %v2010 = vld [vmem:[%s3 + $0x120] sm:$0xff]
    %v2011 = vld [vmem:[%s3 + $0x128] sm:$0xff]
    %v2012 = vld [vmem:[%s3 + $0x130] sm:$0xff]
    %v2013 = vld [vmem:[%s3 + $0x138] sm:$0xff]
    %v2014 = vld [vmem:[%s3 + $0x140] sm:$0xff]
    %v2015 = vld [vmem:[%s3 + $0x148] sm:$0xff]
    %v2016 = vld [vmem:[%s3 + $0x150] sm:$0xff]
    %v2017 = vld [vmem:[%s3 + $0x158] sm:$0xff]
    %v2018 = vld [vmem:[%s3 + $0x160] sm:$0xff]
    %v2019 = vld [vmem:[%s3 + $0x168] sm:$0xff]
    %v2020 = vld [vmem:[%s3 + $0x170] sm:$0xff]
    %v2021 = vld [vmem:[%s3 + $0x178] sm:$0xff]
    %v2022 = vld [vmem:[%s3 + $0x180] sm:$0xff]
    %v2023 = vld [vmem:[%s3 + $0x188] sm:$0xff]
    %v2024 = vld [vmem:[%s3 + $0x190] sm:$0xff]
    %v2025 = vld [vmem:[%s3 + $0x198] sm:$0xff]
    %v2026 = vld [vmem:[%s3 + $0x1a0] sm:$0xff]
    %v2027 = vld [vmem:[%s3 + $0x1a8] sm:$0xff]
    %v2028 = vld [vmem:[%s3 + $0x1b0] sm:$0xff]
    %v2029 = vld [vmem:[%s3 + $0x1b8] sm:$0xff]
    %v2030 = vld [vmem:[%s3 + $0x1c0] sm:$0xff]
    %v2031 = vld [vmem:[%s3 + $0x1c8] sm:$0xff]
    %v2032 = vld [vmem:[%s3 + $0x1d0] sm:$0xff]
    %v2033 = vld [vmem:[%s3 + $0x1d8] sm:$0xff]
    %v2034 = vld [vmem:[%s3 + $0x1e0] sm:$0xff]
    %v2035 = vld [vmem:[%s3 + $0x1e8] sm:$0xff]
    %v2036 = vld [vmem:[%s3 + $0x1f0] sm:$0xff]
    %v2037 = vld [vmem:[%s3 + $0x1f8] sm:$0xff]
    %v2038 = vld [vmem:[%s4] sm:$0x3]
    %v2040 = vlaneseq
    %v2041 = vshrl.u32 %v2040, 7
    %v2042 = vsub.s32 0, %v2041
    %v2043 = vrot.slane %v2038, %v2042
    %v2044 = vlaneseq
    %v2045 = vshrl.u32 %v2044, 7
    %v2046 = vsub.s32 1, %v2045
    %v2047 = vrot.slane %v2038, %v2046
    %v2114 = vunpack.c.l.b16 %v1974
    %v2115 = vunpack.c.h.b16 %v1974
    %v2116 = vunpack.c.l.b16 %v1975
    %v2117 = vunpack.c.h.b16 %v1975
    %v2118 = vunpack.c.l.b16 %v1976
    %v2119 = vunpack.c.h.b16 %v1976
    %v2120 = vunpack.c.l.b16 %v1977
    %v2121 = vunpack.c.h.b16 %v1977
    %v2122 = vunpack.c.l.b16 %v1978
    %v2123 = vunpack.c.h.b16 %v1978
    %v2124 = vunpack.c.l.b16 %v1979
    %v2125 = vunpack.c.h.b16 %v1979
    %v2126 = vunpack.c.l.b16 %v1980
    %v2127 = vunpack.c.h.b16 %v1980
    %v2128 = vunpack.c.l.b16 %v1981
    %v2129 = vunpack.c.h.b16 %v1981
    %v2130 = vunpack.c.l.b16 %v1982
    %v2131 = vunpack.c.h.b16 %v1982
    %v2132 = vunpack.c.l.b16 %v1983
    %v2133 = vunpack.c.h.b16 %v1983
    %v2134 = vunpack.c.l.b16 %v1984
    %v2135 = vunpack.c.h.b16 %v1984
    %v2136 = vunpack.c.l.b16 %v1985
    %v2137 = vunpack.c.h.b16 %v1985
    %v2138 = vunpack.c.l.b16 %v1986
    %v2139 = vunpack.c.h.b16 %v1986
    %v2140 = vunpack.c.l.b16 %v1987
    %v2141 = vunpack.c.h.b16 %v1987
    %v2142 = vunpack.c.l.b16 %v1988
    %v2143 = vunpack.c.h.b16 %v1988
    %v2144 = vunpack.c.l.b16 %v1989
    %v2145 = vunpack.c.h.b16 %v1989
    %v2146 = vunpack.c.l.b16 %v1990
    %v2147 = vunpack.c.h.b16 %v1990
    %v2148 = vunpack.c.l.b16 %v1991
    %v2149 = vunpack.c.h.b16 %v1991
    %v2150 = vunpack.c.l.b16 %v1992
    %v2151 = vunpack.c.h.b16 %v1992
    %v2152 = vunpack.c.l.b16 %v1993
    %v2153 = vunpack.c.h.b16 %v1993
    %v2154 = vunpack.c.l.b16 %v1994
    %v2155 = vunpack.c.h.b16 %v1994
    %v2156 = vunpack.c.l.b16 %v1995
    %v2157 = vunpack.c.h.b16 %v1995
    %v2158 = vunpack.c.l.b16 %v1996
    %v2159 = vunpack.c.h.b16 %v1996
    %v2160 = vunpack.c.l.b16 %v1997
    %v2161 = vunpack.c.h.b16 %v1997
    %v2162 = vunpack.c.l.b16 %v1998
    %v2163 = vunpack.c.h.b16 %v1998
    %v2164 = vunpack.c.l.b16 %v1999
    %v2165 = vunpack.c.h.b16 %v1999
    %v2166 = vunpack.c.l.b16 %v2000
    %v2167 = vunpack.c.h.b16 %v2000
    %v2168 = vunpack.c.l.b16 %v2001
    %v2169 = vunpack.c.h.b16 %v2001
    %v2170 = vunpack.c.l.b16 %v2002
    %v2171 = vunpack.c.h.b16 %v2002
    %v2172 = vunpack.c.l.b16 %v2003
    %v2173 = vunpack.c.h.b16 %v2003
    %v2174 = vunpack.c.l.b16 %v2004
    %v2175 = vunpack.c.h.b16 %v2004
    %v2176 = vunpack.c.l.b16 %v2005
    %v2177 = vunpack.c.h.b16 %v2005
    %v2178 = vunpack.c.l.b16 %v2006
    %v2179 = vunpack.c.h.b16 %v2006
    %v2180 = vunpack.c.l.b16 %v2007
    %v2181 = vunpack.c.h.b16 %v2007
    %v2182 = vunpack.c.l.b16 %v2008
    %v2183 = vunpack.c.h.b16 %v2008
    %v2184 = vunpack.c.l.b16 %v2009
    %v2185 = vunpack.c.h.b16 %v2009
    %v2186 = vunpack.c.l.b16 %v2010
    %v2187 = vunpack.c.h.b16 %v2010
    %v2188 = vunpack.c.l.b16 %v2011
    %v2189 = vunpack.c.h.b16 %v2011
    %v2190 = vunpack.c.l.b16 %v2012
    %v2191 = vunpack.c.h.b16 %v2012
    %v2192 = vunpack.c.l.b16 %v2013
    %v2193 = vunpack.c.h.b16 %v2013
    %v2194 = vunpack.c.l.b16 %v2014
    %v2195 = vunpack.c.h.b16 %v2014
    %v2196 = vunpack.c.l.b16 %v2015
    %v2197 = vunpack.c.h.b16 %v2015
    %v2198 = vunpack.c.l.b16 %v2016
    %v2199 = vunpack.c.h.b16 %v2016
    %v2200 = vunpack.c.l.b16 %v2017
    %v2201 = vunpack.c.h.b16 %v2017
    %v2202 = vunpack.c.l.b16 %v2018
    %v2203 = vunpack.c.h.b16 %v2018
    %v2204 = vunpack.c.l.b16 %v2019
    %v2205 = vunpack.c.h.b16 %v2019
    %v2206 = vunpack.c.l.b16 %v2020
    %v2207 = vunpack.c.h.b16 %v2020
    %v2208 = vunpack.c.l.b16 %v2021
    %v2209 = vunpack.c.h.b16 %v2021
    %v2210 = vunpack.c.l.b16 %v2022
    %v2211 = vunpack.c.h.b16 %v2022
    %v2212 = vunpack.c.l.b16 %v2023
    %v2213 = vunpack.c.h.b16 %v2023
    %v2214 = vunpack.c.l.b16 %v2024
    %v2215 = vunpack.c.h.b16 %v2024
    %v2216 = vunpack.c.l.b16 %v2025
    %v2217 = vunpack.c.h.b16 %v2025
    %v2218 = vunpack.c.l.b16 %v2026
    %v2219 = vunpack.c.h.b16 %v2026
    %v2220 = vunpack.c.l.b16 %v2027
    %v2221 = vunpack.c.h.b16 %v2027
    %v2222 = vunpack.c.l.b16 %v2028
    %v2223 = vunpack.c.h.b16 %v2028
    %v2224 = vunpack.c.l.b16 %v2029
    %v2225 = vunpack.c.h.b16 %v2029
    %v2226 = vunpack.c.l.b16 %v2030
    %v2227 = vunpack.c.h.b16 %v2030
    %v2228 = vunpack.c.l.b16 %v2031
    %v2229 = vunpack.c.h.b16 %v2031
    %v2230 = vunpack.c.l.b16 %v2032
    %v2231 = vunpack.c.h.b16 %v2032
    %v2232 = vunpack.c.l.b16 %v2033
    %v2233 = vunpack.c.h.b16 %v2033
    %v2234 = vunpack.c.l.b16 %v2034
    %v2235 = vunpack.c.h.b16 %v2034
    %v2236 = vunpack.c.l.b16 %v2035
    %v2237 = vunpack.c.h.b16 %v2035
    %v2238 = vunpack.c.l.b16 %v2036
    %v2239 = vunpack.c.h.b16 %v2036
    %v2240 = vunpack.c.l.b16 %v2037
    %v2241 = vunpack.c.h.b16 %v2037
    %v2242 = vpack.c.b16 %v2116, %v2114
    %v2243 = vpack.c.b16 %v2117, %v2115
    %v2244 = vpack.c.b16 %v2120, %v2118
    %v2245 = vpack.c.b16 %v2121, %v2119
    %v2246 = vpack.c.b16 %v2124, %v2122
    %v2247 = vpack.c.b16 %v2125, %v2123
    %v2248 = vpack.c.b16 %v2128, %v2126
    %v2249 = vpack.c.b16 %v2129, %v2127
    %v2250 = vpack.c.b16 %v2132, %v2130
    %v2251 = vpack.c.b16 %v2133, %v2131
    %v2252 = vpack.c.b16 %v2136, %v2134
    %v2253 = vpack.c.b16 %v2137, %v2135
    %v2254 = vpack.c.b16 %v2140, %v2138
    %v2255 = vpack.c.b16 %v2141, %v2139
    %v2256 = vpack.c.b16 %v2144, %v2142
    %v2257 = vpack.c.b16 %v2145, %v2143
    %v2258 = vpack.c.b16 %v2148, %v2146
    %v2259 = vpack.c.b16 %v2149, %v2147
    %v2260 = vpack.c.b16 %v2152, %v2150
    %v2261 = vpack.c.b16 %v2153, %v2151
    %v2262 = vpack.c.b16 %v2156, %v2154
    %v2263 = vpack.c.b16 %v2157, %v2155
    %v2264 = vpack.c.b16 %v2160, %v2158
    %v2265 = vpack.c.b16 %v2161, %v2159
    %v2266 = vpack.c.b16 %v2164, %v2162
    %v2267 = vpack.c.b16 %v2165, %v2163
    %v2268 = vpack.c.b16 %v2168, %v2166
    %v2269 = vpack.c.b16 %v2169, %v2167
    %v2270 = vpack.c.b16 %v2172, %v2170
    %v2271 = vpack.c.b16 %v2173, %v2171
    %v2272 = vpack.c.b16 %v2176, %v2174
    %v2273 = vpack.c.b16 %v2177, %v2175
    %v2274 = vpack.c.b16 %v2180, %v2178
    %v2275 = vpack.c.b16 %v2181, %v2179
    %v2276 = vpack.c.b16 %v2184, %v2182
    %v2277 = vpack.c.b16 %v2185, %v2183
    %v2278 = vpack.c.b16 %v2188, %v2186
    %v2279 = vpack.c.b16 %v2189, %v2187
    %v2280 = vpack.c.b16 %v2192, %v2190
    %v2281 = vpack.c.b16 %v2193, %v2191
    %v2282 = vpack.c.b16 %v2196, %v2194
    %v2283 = vpack.c.b16 %v2197, %v2195
    %v2284 = vpack.c.b16 %v2200, %v2198
    %v2285 = vpack.c.b16 %v2201, %v2199
    %v2286 = vpack.c.b16 %v2204, %v2202
    %v2287 = vpack.c.b16 %v2205, %v2203
    %v2288 = vpack.c.b16 %v2208, %v2206
    %v2289 = vpack.c.b16 %v2209, %v2207
    %v2290 = vpack.c.b16 %v2212, %v2210
    %v2291 = vpack.c.b16 %v2213, %v2211
    %v2292 = vpack.c.b16 %v2216, %v2214
    %v2293 = vpack.c.b16 %v2217, %v2215
    %v2294 = vpack.c.b16 %v2220, %v2218
    %v2295 = vpack.c.b16 %v2221, %v2219
    %v2296 = vpack.c.b16 %v2224, %v2222
    %v2297 = vpack.c.b16 %v2225, %v2223
    %v2298 = vpack.c.b16 %v2228, %v2226
    %v2299 = vpack.c.b16 %v2229, %v2227
    %v2300 = vpack.c.b16 %v2232, %v2230
    %v2301 = vpack.c.b16 %v2233, %v2231
    %v2302 = vpack.c.b16 %v2236, %v2234
    %v2303 = vpack.c.b16 %v2237, %v2235
    %v2304 = vpack.c.b16 %v2240, %v2238
    %v2305 = vpack.c.b16 %v2241, %v2239
    %2370 = vmatprep.subr.bf16.mxu0 %v2243
    %2371 = vmatpush1.bf16.msra.mxu0 %v2242
    %2372 = vmatprep.subr.bf16.mxu0 %v2245
    %2373 = vmatpush1.bf16.msra.mxu0 %v2244
    %2374 = vmatprep.subr.bf16.mxu0 %v2247
    %2375 = vmatpush1.bf16.msra.mxu0 %v2246
    %2376 = vmatprep.subr.bf16.mxu0 %v2249
    %2377 = vmatpush1.bf16.msra.mxu0 %v2248
    %2378 = vmatprep.subr.bf16.mxu0 %v2251
    %2379 = vmatpush1.bf16.msra.mxu0 %v2250
    %2380 = vmatprep.subr.bf16.mxu0 %v2253
    %2381 = vmatpush1.bf16.msra.mxu0 %v2252
    %2382 = vmatprep.subr.bf16.mxu0 %v2255
    %2383 = vmatpush1.bf16.msra.mxu0 %v2254
    %2384 = vmatprep.subr.bf16.mxu0 %v2257
    %2385 = vmatpush1.bf16.msra.mxu0 %v2256
    %2386 = vmatprep.subr.bf16.mxu0 %v2259
    %2387 = vmatpush1.bf16.msra.mxu0 %v2258
    %2388 = vmatprep.subr.bf16.mxu0 %v2261
    %2389 = vmatpush1.bf16.msra.mxu0 %v2260
    %2390 = vmatprep.subr.bf16.mxu0 %v2263
    %2391 = vmatpush1.bf16.msra.mxu0 %v2262
    %2392 = vmatprep.subr.bf16.mxu0 %v2265
    %2393 = vmatpush1.bf16.msra.mxu0 %v2264
    %2394 = vmatprep.subr.bf16.mxu0 %v2267
    %2395 = vmatpush1.bf16.msra.mxu0 %v2266
    %2396 = vmatprep.subr.bf16.mxu0 %v2269
    %2397 = vmatpush1.bf16.msra.mxu0 %v2268
    %2398 = vmatprep.subr.bf16.mxu0 %v2271
    %2399 = vmatpush1.bf16.msra.mxu0 %v2270
    %2400 = vmatprep.subr.bf16.mxu0 %v2273
    %2401 = vmatpush1.bf16.msra.mxu0 %v2272
    %2402 = vmatprep.mubr.bf16.mxu0 %v1959
    %2403 = vmatmul.mubr.bf16.gmra.mrb[0].mxu0 %v1958
    %v2404 = vpop.f32.mrb[0].mxu0
    %v2405 = vadd.f32 %v2043, %v2404
    %v2406 = vpop.f32.mrb[0].mxu0
    %v2407 = vadd.f32 %v2047, %v2406
    %v2408 = vpop.f32.mrb[0].mxu0
    %v2409 = vadd.f32 %v2043, %v2408
    %v2410 = vpop.f32.mrb[0].mxu0
    %v2411 = vadd.f32 %v2047, %v2410
    %2412 = vmatprep.mubr.bf16.mxu0 %v1963
    %2413 = vmatmul.mubr.bf16.gmra.mrb[0].mxu0 %v1962
    %v2414 = vpop.f32.mrb[0].mxu0
    %v2415 = vadd.f32 %v2043, %v2414
    %v2416 = vpop.f32.mrb[0].mxu0
    %v2417 = vadd.f32 %v2047, %v2416
    %v2418 = vpop.f32.mrb[0].mxu0
    %v2419 = vadd.f32 %v2043, %v2418
    %v2420 = vpop.f32.mrb[0].mxu0
    %v2421 = vadd.f32 %v2047, %v2420
    %2422 = vmatprep.mubr.bf16.mxu0 %v1967
    %2423 = vmatmul.mubr.bf16.gmra.mrb[0].mxu0 %v1966
    %v2424 = vpop.f32.mrb[0].mxu0
    %v2425 = vadd.f32 %v2043, %v2424
    %v2426 = vpop.f32.mrb[0].mxu0
    %v2427 = vadd.f32 %v2047, %v2426
    %v2428 = vpop.f32.mrb[0].mxu0
    %v2429 = vadd.f32 %v2043, %v2428
    %v2430 = vpop.f32.mrb[0].mxu0
    %v2431 = vadd.f32 %v2047, %v2430
    %2432 = vmatprep.mubr.bf16.mxu0 %v1971
    %2433 = vmatmul.mubr.bf16.gmra.mrb[0].mxu0 %v1970
    %v2434 = vpop.f32.mrb[0].mxu0
    %v2435 = vadd.f32 %v2043, %v2434
    %v2436 = vpop.f32.mrb[0].mxu0
    %v2437 = vadd.f32 %v2047, %v2436
    %v2438 = vpop.f32.mrb[0].mxu0
    %v2439 = vadd.f32 %v2043, %v2438
    %v2440 = vpop.f32.mrb[0].mxu0
    %v2441 = vadd.f32 %v2047, %v2440
    %2442 = vdwg.mxu0
    %2443 = vmatprep.subr.bf16.mxu0 %v2275
    %2444 = vmatpush1.bf16.msra.mxu0 %v2274
    %2445 = vmatprep.subr.bf16.mxu0 %v2277
    %2446 = vmatpush1.bf16.msra.mxu0 %v2276
    %2447 = vmatprep.subr.bf16.mxu0 %v2279
    %2448 = vmatpush1.bf16.msra.mxu0 %v2278
    %2449 = vmatprep.subr.bf16.mxu0 %v2281
    %2450 = vmatpush1.bf16.msra.mxu0 %v2280
    %2451 = vmatprep.subr.bf16.mxu0 %v2283
    %2452 = vmatpush1.bf16.msra.mxu0 %v2282
    %2453 = vmatprep.subr.bf16.mxu0 %v2285
    %2454 = vmatpush1.bf16.msra.mxu0 %v2284
    %2455 = vmatprep.subr.bf16.mxu0 %v2287
    %2456 = vmatpush1.bf16.msra.mxu0 %v2286
    %2457 = vmatprep.subr.bf16.mxu0 %v2289
    %2458 = vmatpush1.bf16.msra.mxu0 %v2288
    %2459 = vmatprep.subr.bf16.mxu0 %v2291
    %2460 = vmatpush1.bf16.msra.mxu0 %v2290
    %2461 = vmatprep.subr.bf16.mxu0 %v2293
    %2462 = vmatpush1.bf16.msra.mxu0 %v2292
    %2463 = vmatprep.subr.bf16.mxu0 %v2295
    %2464 = vmatpush1.bf16.msra.mxu0 %v2294
    %2465 = vmatprep.subr.bf16.mxu0 %v2297
    %2466 = vmatpush1.bf16.msra.mxu0 %v2296
    %2467 = vmatprep.subr.bf16.mxu0 %v2299
    %2468 = vmatpush1.bf16.msra.mxu0 %v2298
    %2469 = vmatprep.subr.bf16.mxu0 %v2301
    %2470 = vmatpush1.bf16.msra.mxu0 %v2300
    %2471 = vmatprep.subr.bf16.mxu0 %v2303
    %2472 = vmatpush1.bf16.msra.mxu0 %v2302
    %2473 = vmatprep.subr.bf16.mxu0 %v2305
    %2474 = vmatpush1.bf16.msra.mxu0 %v2304
    %2475 = vmatprep.mubr.bf16.mxu0 %v1961
    %2476 = vmatmul.mubr.bf16.gmra.mrb[0].mxu0 %v1960
    %v2477 = vpop.f32.mrb[0].mxu0
    %v2478 = vadd.f32 %v2405, %v2477
    %v2479 = vpop.f32.mrb[0].mxu0
    %v2480 = vadd.f32 %v2407, %v2479
    %v2481 = vpop.f32.mrb[0].mxu0
    %v2482 = vadd.f32 %v2409, %v2481
    %v2483 = vpop.f32.mrb[0].mxu0
    %v2484 = vadd.f32 %v2411, %v2483
    %2485 = vmatprep.mubr.bf16.mxu0 %v1965
    %2486 = vmatmul.mubr.bf16.gmra.mrb[0].mxu0 %v1964
    %v2487 = vpop.f32.mrb[0].mxu0
    %v2488 = vadd.f32 %v2415, %v2487
    %v2489 = vpop.f32.mrb[0].mxu0
    %v2490 = vadd.f32 %v2417, %v2489
    %v2491 = vpop.f32.mrb[0].mxu0
    %v2492 = vadd.f32 %v2419, %v2491
    %v2493 = vpop.f32.mrb[0].mxu0
    %v2494 = vadd.f32 %v2421, %v2493
    %2495 = vmatprep.mubr.bf16.mxu0 %v1969
    %2496 = vmatmul.mubr.bf16.gmra.mrb[0].mxu0 %v1968
    %v2497 = vpop.f32.mrb[0].mxu0
    %v2498 = vadd.f32 %v2425, %v2497
    %v2499 = vpop.f32.mrb[0].mxu0
    %v2500 = vadd.f32 %v2427, %v2499
    %v2501 = vpop.f32.mrb[0].mxu0
    %v2502 = vadd.f32 %v2429, %v2501
    %v2503 = vpop.f32.mrb[0].mxu0
    %v2504 = vadd.f32 %v2431, %v2503
    %2505 = vmatprep.mubr.bf16.mxu0 %v1973
    %2506 = vmatmul.mubr.bf16.gmra.mrb[0].mxu0 %v1972
    %v2507 = vpop.f32.mrb[0].mxu0
    %v2508 = vadd.f32 %v2435, %v2507
    %v2509 = vpop.f32.mrb[0].mxu0
    %v2510 = vadd.f32 %v2437, %v2509
    %v2511 = vpop.f32.mrb[0].mxu0
    %v2512 = vadd.f32 %v2439, %v2511
    %v2513 = vpop.f32.mrb[0].mxu0
    %v2514 = vadd.f32 %v2441, %v2513
    %2515 = vdwg.mxu0
    %v2516 = vmax.f32 %v2478, 0.0
    %v2517 = vmax.f32 %v2480, 0.0
    %v2518 = vmax.f32 %v2482, 0.0
    %v2519 = vmax.f32 %v2484, 0.0
    %v2520 = vmax.f32 %v2488, 0.0
    %v2521 = vmax.f32 %v2490, 0.0
    %v2522 = vmax.f32 %v2492, 0.0
    %v2523 = vmax.f32 %v2494, 0.0
    %v2524 = vmax.f32 %v2498, 0.0
    %v2525 = vmax.f32 %v2500, 0.0
    %v2526 = vmax.f32 %v2502, 0.0
    %v2527 = vmax.f32 %v2504, 0.0
    %v2528 = vmax.f32 %v2508, 0.0
    %v2529 = vmax.f32 %v2510, 0.0
    %v2530 = vmax.f32 %v2512, 0.0
    %v2531 = vmax.f32 %v2514, 0.0
    %v2532 = vpack.c.bf16 %v2518, %v2516
    %v2533 = vpack.c.bf16 %v2519, %v2517
    %v2534 = vpack.c.bf16 %v2522, %v2520
    %v2535 = vpack.c.bf16 %v2523, %v2521
    %v2536 = vpack.c.bf16 %v2526, %v2524
    %v2537 = vpack.c.bf16 %v2527, %v2525
    %v2538 = vpack.c.bf16 %v2530, %v2528
    %v2539 = vpack.c.bf16 %v2531, %v2529
    %v2540 = vld [vmem:[%s5] sm:$0xf]
    %v2541 = vld [vmem:[%s5 + $0x4] sm:$0xf]
    %v2542 = vld [vmem:[%s5 + $0x8] sm:$0xf]
    %v2543 = vld [vmem:[%s5 + $0xc] sm:$0xf]
    %v2544 = vld [vmem:[%s5 + $0x10] sm:$0xf]
    %v2545 = vld [vmem:[%s5 + $0x14] sm:$0xf]
    %v2546 = vld [vmem:[%s5 + $0x18] sm:$0xf]
    %v2547 = vld [vmem:[%s5 + $0x1c] sm:$0xf]
    %v2548 = vld [vmem:[%s5 + $0x20] sm:$0xf]
    %v2549 = vld [vmem:[%s5 + $0x24] sm:$0xf]
    %v2550 = vld [vmem:[%s5 + $0x28] sm:$0xf]
    %v2551 = vld [vmem:[%s5 + $0x2c] sm:$0xf]
    %v2552 = vld [vmem:[%s5 + $0x30] sm:$0xf]
    %v2553 = vld [vmem:[%s5 + $0x34] sm:$0xf]
    %v2554 = vld [vmem:[%s5 + $0x38] sm:$0xf]
    %v2555 = vld [vmem:[%s5 + $0x3c] sm:$0xf]
    %v2556 = vld [vmem:[%s5 + $0x40] sm:$0xf]
    %v2557 = vld [vmem:[%s5 + $0x44] sm:$0xf]
    %v2558 = vld [vmem:[%s5 + $0x48] sm:$0xf]
    %v2559 = vld [vmem:[%s5 + $0x4c] sm:$0xf]
    %v2560 = vld [vmem:[%s5 + $0x50] sm:$0xf]
    %v2561 = vld [vmem:[%s5 + $0x54] sm:$0xf]
    %v2562 = vld [vmem:[%s5 + $0x58] sm:$0xf]
    %v2563 = vld [vmem:[%s5 + $0x5c] sm:$0xf]
    %v2564 = vld [vmem:[%s5 + $0x60] sm:$0xf]
    %v2565 = vld [vmem:[%s5 + $0x64] sm:$0xf]
    %v2566 = vld [vmem:[%s5 + $0x68] sm:$0xf]
    %v2567 = vld [vmem:[%s5 + $0x6c] sm:$0xf]
    %v2568 = vld [vmem:[%s5 + $0x70] sm:$0xf]
    %v2569 = vld [vmem:[%s5 + $0x74] sm:$0xf]
    %v2570 = vld [vmem:[%s5 + $0x78] sm:$0xf]
    %v2571 = vld [vmem:[%s5 + $0x7c] sm:$0xf]
    %v2572 = vld [vmem:[%s6] sm:$0x1]
    %v2574 = vlaneseq
    %v2575 = vshrl.u32 %v2574, 7
    %v2576 = vsub.s32 0, %v2575
    %v2577 = vrot.slane %v2572, %v2576
    %v2611 = vunpack.c.l.b16 %v2540
    %v2612 = vunpack.c.l.b16 %v2541
    %v2613 = vunpack.c.l.b16 %v2542
    %v2614 = vunpack.c.l.b16 %v2543
    %v2615 = vunpack.c.l.b16 %v2544
    %v2616 = vunpack.c.l.b16 %v2545
    %v2617 = vunpack.c.l.b16 %v2546
    %v2618 = vunpack.c.l.b16 %v2547
    %v2619 = vunpack.c.l.b16 %v2548
    %v2620 = vunpack.c.l.b16 %v2549
    %v2621 = vunpack.c.l.b16 %v2550
    %v2622 = vunpack.c.l.b16 %v2551
    %v2623 = vunpack.c.l.b16 %v2552
    %v2624 = vunpack.c.l.b16 %v2553
    %v2625 = vunpack.c.l.b16 %v2554
    %v2626 = vunpack.c.l.b16 %v2555
    %v2627 = vunpack.c.l.b16 %v2556
    %v2628 = vunpack.c.l.b16 %v2557
    %v2629 = vunpack.c.l.b16 %v2558
    %v2630 = vunpack.c.l.b16 %v2559
    %v2631 = vunpack.c.l.b16 %v2560
    %v2632 = vunpack.c.l.b16 %v2561
    %v2633 = vunpack.c.l.b16 %v2562
    %v2634 = vunpack.c.l.b16 %v2563
    %v2635 = vunpack.c.l.b16 %v2564
    %v2636 = vunpack.c.l.b16 %v2565
    %v2637 = vunpack.c.l.b16 %v2566
    %v2638 = vunpack.c.l.b16 %v2567
    %v2639 = vunpack.c.l.b16 %v2568
    %v2640 = vunpack.c.l.b16 %v2569
    %v2641 = vunpack.c.l.b16 %v2570
    %v2642 = vunpack.c.l.b16 %v2571
    %v2643 = vpack.c.b16 %v2612, %v2611
    %v2644 = vpack.c.b16 %v2614, %v2613
    %v2645 = vpack.c.b16 %v2616, %v2615
    %v2646 = vpack.c.b16 %v2618, %v2617
    %v2647 = vpack.c.b16 %v2620, %v2619
    %v2648 = vpack.c.b16 %v2622, %v2621
    %v2649 = vpack.c.b16 %v2624, %v2623
    %v2650 = vpack.c.b16 %v2626, %v2625
    %v2651 = vpack.c.b16 %v2628, %v2627
    %v2652 = vpack.c.b16 %v2630, %v2629
    %v2653 = vpack.c.b16 %v2632, %v2631
    %v2654 = vpack.c.b16 %v2634, %v2633
    %v2655 = vpack.c.b16 %v2636, %v2635
    %v2656 = vpack.c.b16 %v2638, %v2637
    %v2657 = vpack.c.b16 %v2640, %v2639
    %v2658 = vpack.c.b16 %v2642, %v2641
    %2675 = vmatprep.subr.bf16.mxu0 0
    %2676 = vmatpush1.bf16.msra.mxu0 %v2643
    %2677 = vmatprep.subr.bf16.mxu0 0
    %2678 = vmatpush1.bf16.msra.mxu0 %v2644
    %2679 = vmatprep.subr.bf16.mxu0 0
    %2680 = vmatpush1.bf16.msra.mxu0 %v2645
    %2681 = vmatprep.subr.bf16.mxu0 0
    %2682 = vmatpush1.bf16.msra.mxu0 %v2646
    %2683 = vmatprep.subr.bf16.mxu0 0
    %2684 = vmatpush1.bf16.msra.mxu0 %v2647
    %2685 = vmatprep.subr.bf16.mxu0 0
    %2686 = vmatpush1.bf16.msra.mxu0 %v2648
    %2687 = vmatprep.subr.bf16.mxu0 0
    %2688 = vmatpush1.bf16.msra.mxu0 %v2649
    %2689 = vmatprep.subr.bf16.mxu0 0
    %2690 = vmatpush1.bf16.msra.mxu0 %v2650
    %2691 = vmatprep.subr.bf16.mxu0 0
    %2692 = vmatpush1.bf16.msra.mxu0 %v2651
    %2693 = vmatprep.subr.bf16.mxu0 0
    %2694 = vmatpush1.bf16.msra.mxu0 %v2652
    %2695 = vmatprep.subr.bf16.mxu0 0
    %2696 = vmatpush1.bf16.msra.mxu0 %v2653
    %2697 = vmatprep.subr.bf16.mxu0 0
    %2698 = vmatpush1.bf16.msra.mxu0 %v2654
    %2699 = vmatprep.subr.bf16.mxu0 0
    %2700 = vmatpush1.bf16.msra.mxu0 %v2655
    %2701 = vmatprep.subr.bf16.mxu0 0
    %2702 = vmatpush1.bf16.msra.mxu0 %v2656
    %2703 = vmatprep.subr.bf16.mxu0 0
    %2704 = vmatpush1.bf16.msra.mxu0 %v2657
    %2705 = vmatprep.subr.bf16.mxu0 0
    %2706 = vmatpush1.bf16.msra.mxu0 %v2658
    %2707 = vmatprep.mubr.bf16.mxu0 %v2533
    %2708 = vmatmul.mubr.bf16.gmra.mrb[0].mxu0 %v2532
    %v2709 = vpop.f32.mrb[0].mxu0
    %v2710 = vadd.f32 %v2577, %v2709
    %v2711 = vpop.f32.mrb[0].mxu0
    %v2712 = vpop.f32.mrb[0].mxu0
    %v2713 = vadd.f32 %v2577, %v2712
    %v2714 = vpop.f32.mrb[0].mxu0
    %2715 = vmatprep.mubr.bf16.mxu0 %v2535
    %2716 = vmatmul.mubr.bf16.gmra.mrb[0].mxu0 %v2534
    %v2717 = vpop.f32.mrb[0].mxu0
    %v2718 = vadd.f32 %v2577, %v2717
    %v2719 = vpop.f32.mrb[0].mxu0
    %v2720 = vpop.f32.mrb[0].mxu0
    %v2721 = vadd.f32 %v2577, %v2720
    %v2722 = vpop.f32.mrb[0].mxu0
    %2723 = vmatprep.mubr.bf16.mxu0 %v2537
    %2724 = vmatmul.mubr.bf16.gmra.mrb[0].mxu0 %v2536
    %v2725 = vpop.f32.mrb[0].mxu0
    %v2726 = vadd.f32 %v2577, %v2725
    %v2727 = vpop.f32.mrb[0].mxu0
    %v2728 = vpop.f32.mrb[0].mxu0
    %v2729 = vadd.f32 %v2577, %v2728
    %v2730 = vpop.f32.mrb[0].mxu0
    %2731 = vmatprep.mubr.bf16.mxu0 %v2539
    %2732 = vmatmul.mubr.bf16.gmra.mrb[0].mxu0 %v2538
    %v2733 = vpop.f32.mrb[0].mxu0
    %v2734 = vadd.f32 %v2577, %v2733
    %v2735 = vpop.f32.mrb[0].mxu0
    %v2736 = vpop.f32.mrb[0].mxu0
    %v2737 = vadd.f32 %v2577, %v2736
    %v2738 = vpop.f32.mrb[0].mxu0
    %2739 = vdwg.mxu0
    %v2740 = vmax.f32 %v2710, 0.0
    %v2741 = vmax.f32 %v2713, 0.0
    %v2742 = vmax.f32 %v2718, 0.0
    %v2743 = vmax.f32 %v2721, 0.0
    %v2744 = vmax.f32 %v2726, 0.0
    %v2745 = vmax.f32 %v2729, 0.0
    %v2746 = vmax.f32 %v2734, 0.0
    %v2747 = vmax.f32 %v2737, 0.0
    %v2748 = vpack.c.bf16 %v2741, %v2740
    %v2749 = vpack.c.bf16 %v2743, %v2742
    %v2750 = vpack.c.bf16 %v2745, %v2744
    %v2751 = vpack.c.bf16 %v2747, %v2746
    %v2752 = vld [vmem:[%s7] sm:$0xf]
    %v2753 = vld [vmem:[%s7 + $0x4] sm:$0xf]
    %v2754 = vld [vmem:[%s7 + $0x8] sm:$0xf]
    %v2755 = vld [vmem:[%s7 + $0xc] sm:$0xf]
    %v2756 = vld [vmem:[%s7 + $0x10] sm:$0xf]
    %v2757 = vld [vmem:[%s7 + $0x14] sm:$0xf]
    %v2758 = vld [vmem:[%s7 + $0x18] sm:$0xf]
    %v2759 = vld [vmem:[%s7 + $0x1c] sm:$0xf]
    %v2760 = vld [vmem:[%s7 + $0x20] sm:$0xf]
    %v2761 = vld [vmem:[%s7 + $0x24] sm:$0xf]
    %v2762 = vld [vmem:[%s7 + $0x28] sm:$0xf]
    %v2763 = vld [vmem:[%s7 + $0x2c] sm:$0xf]
    %v2764 = vld [vmem:[%s7 + $0x30] sm:$0xf]
    %v2765 = vld [vmem:[%s7 + $0x34] sm:$0xf]
    %v2766 = vld [vmem:[%s7 + $0x38] sm:$0xf]
    %v2767 = vld [vmem:[%s7 + $0x3c] sm:$0xf]
    %v2768 = vld [vmem:[%s8] sm:$0x1]
    %v2770 = vlaneseq
    %v2771 = vshrl.u32 %v2770, 7
    %v2772 = vsub.s32 0, %v2771
    %v2773 = vrot.slane %v2768, %v2772
    %v2791 = vunpack.c.l.b16 %v2752
    %v2792 = vunpack.c.l.b16 %v2753
    %v2793 = vunpack.c.l.b16 %v2754
    %v2794 = vunpack.c.l.b16 %v2755
    %v2795 = vunpack.c.l.b16 %v2756
    %v2796 = vunpack.c.l.b16 %v2757
    %v2797 = vunpack.c.l.b16 %v2758
    %v2798 = vunpack.c.l.b16 %v2759
    %v2799 = vunpack.c.l.b16 %v2760
    %v2800 = vunpack.c.l.b16 %v2761
    %v2801 = vunpack.c.l.b16 %v2762
    %v2802 = vunpack.c.l.b16 %v2763
    %v2803 = vunpack.c.l.b16 %v2764
    %v2804 = vunpack.c.l.b16 %v2765
    %v2805 = vunpack.c.l.b16 %v2766
    %v2806 = vunpack.c.l.b16 %v2767
    %v2807 = vpack.c.b16 %v2792, %v2791
    %v2808 = vpack.c.b16 %v2794, %v2793
    %v2809 = vpack.c.b16 %v2796, %v2795
    %v2810 = vpack.c.b16 %v2798, %v2797
    %v2811 = vpack.c.b16 %v2800, %v2799
    %v2812 = vpack.c.b16 %v2802, %v2801
    %v2813 = vpack.c.b16 %v2804, %v2803
    %v2814 = vpack.c.b16 %v2806, %v2805
    %2823 = vmatprep.subr.bf16.mxu0 0
    %2824 = vmatpush1.bf16.msra.mxu0 %v2807
    %2825 = vmatprep.subr.bf16.mxu0 0
    %2826 = vmatpush1.bf16.msra.mxu0 %v2808
    %2827 = vmatprep.subr.bf16.mxu0 0
    %2828 = vmatpush1.bf16.msra.mxu0 %v2809
    %2829 = vmatprep.subr.bf16.mxu0 0
    %2830 = vmatpush1.bf16.msra.mxu0 %v2810
    %2831 = vmatprep.subr.bf16.mxu0 0
    %2832 = vmatpush1.bf16.msra.mxu0 %v2811
    %2833 = vmatprep.subr.bf16.mxu0 0
    %2834 = vmatpush1.bf16.msra.mxu0 %v2812
    %2835 = vmatprep.subr.bf16.mxu0 0
    %2836 = vmatpush1.bf16.msra.mxu0 %v2813
    %2837 = vmatprep.subr.bf16.mxu0 0
    %2838 = vmatpush1.bf16.msra.mxu0 %v2814
    %2839 = vmatprep.subr.bf16.mxu0 0
    %2840 = vmatpush1.bf16.msra.mxu0 0
    %2841 = vmatprep.subr.bf16.mxu0 0
    %2842 = vmatpush1.bf16.msra.mxu0 0
    %2843 = vmatprep.subr.bf16.mxu0 0
    %2844 = vmatpush1.bf16.msra.mxu0 0
    %2845 = vmatprep.subr.bf16.mxu0 0
    %2846 = vmatpush1.bf16.msra.mxu0 0
    %2847 = vmatprep.subr.bf16.mxu0 0
    %2848 = vmatpush1.bf16.msra.mxu0 0
    %2849 = vmatprep.subr.bf16.mxu0 0
    %2850 = vmatpush1.bf16.msra.mxu0 0
    %2851 = vmatprep.subr.bf16.mxu0 0
    %2852 = vmatpush1.bf16.msra.mxu0 0
    %2853 = vmatprep.subr.bf16.mxu0 0
    %2854 = vmatpush1.bf16.msra.mxu0 0
    %2855 = vmatprep.mubr.bf16.mxu0 0
    %2856 = vmatmul.mubr.bf16.gmra.mrb[0].mxu0 %v2748
    %v2857 = vpop.f32.mrb[0].mxu0
    %v2858 = vadd.f32 %v2773, %v2857
    %v2859 = vpop.f32.mrb[0].mxu0
    %v2860 = vpop.f32.mrb[0].mxu0
    %v2861 = vadd.f32 %v2773, %v2860
    %v2862 = vpop.f32.mrb[0].mxu0
    %2863 = vmatprep.mubr.bf16.mxu0 0
    %2864 = vmatmul.mubr.bf16.gmra.mrb[0].mxu0 %v2749
    %v2865 = vpop.f32.mrb[0].mxu0
    %v2866 = vadd.f32 %v2773, %v2865
    %v2867 = vpop.f32.mrb[0].mxu0
    %v2868 = vpop.f32.mrb[0].mxu0
    %v2869 = vadd.f32 %v2773, %v2868
    %v2870 = vpop.f32.mrb[0].mxu0
    %2871 = vmatprep.mubr.bf16.mxu0 0
    %2872 = vmatmul.mubr.bf16.gmra.mrb[0].mxu0 %v2750
    %v2873 = vpop.f32.mrb[0].mxu0
    %v2874 = vadd.f32 %v2773, %v2873
    %v2875 = vpop.f32.mrb[0].mxu0
    %v2876 = vpop.f32.mrb[0].mxu0
    %v2877 = vadd.f32 %v2773, %v2876
    %v2878 = vpop.f32.mrb[0].mxu0
    %2879 = vmatprep.mubr.bf16.mxu0 0
    %2880 = vmatmul.mubr.bf16.gmra.mrb[0].mxu0 %v2751
    %v2881 = vpop.f32.mrb[0].mxu0
    %v2882 = vadd.f32 %v2773, %v2881
    %v2883 = vpop.f32.mrb[0].mxu0
    %v2884 = vpop.f32.mrb[0].mxu0
    %v2885 = vadd.f32 %v2773, %v2884
    %v2886 = vpop.f32.mrb[0].mxu0
    %2887 = vdwg.mxu0
    %v2888 = vpack.c.bf16 %v2861, %v2858
    %v2889 = vpack.c.bf16 %v2869, %v2866
    %v2890 = vpack.c.bf16 %v2877, %v2874
    %v2891 = vpack.c.bf16 %v2885, %v2882
    %v2896 = vunpack.c.l.b16 %v2888
    %v2897 = vunpack.c.h.b16 %v2888
    %v2898 = vunpack.c.l.b16 %v2889
    %v2899 = vunpack.c.h.b16 %v2889
    %v2900 = vunpack.c.l.b16 %v2890
    %v2901 = vunpack.c.h.b16 %v2890
    %v2902 = vunpack.c.l.b16 %v2891
    %v2903 = vunpack.c.h.b16 %v2891
    %v2904 = vpack.c.b16 %v2896, %v2896
    %v2905 = vpack.c.b16 %v2897, %v2897
    %v2906 = vpack.c.b16 %v2898, %v2898
    %v2907 = vpack.c.b16 %v2899, %v2899
    %v2908 = vpack.c.b16 %v2900, %v2900
    %v2909 = vpack.c.b16 %v2901, %v2901
    %v2910 = vpack.c.b16 %v2902, %v2902
    %v2911 = vpack.c.b16 %v2903, %v2903
    %2920 = vst [vmem:[%s9] sm:$0xf] %v2904
    %2921 = vst [vmem:[%s9 + $0x4] sm:$0xf] %v2905
    %2922 = vst [vmem:[%s9 + $0x8] sm:$0xf] %v2906
    %2923 = vst [vmem:[%s9 + $0xc] sm:$0xf] %v2907
    %2924 = vst [vmem:[%s9 + $0x10] sm:$0xf] %v2908
    %2925 = vst [vmem:[%s9 + $0x14] sm:$0xf] %v2909
    %2926 = vst [vmem:[%s9 + $0x18] sm:$0xf] %v2910
    %2927 = vst [vmem:[%s9 + $0x1c] sm:$0xf] %v2911
    // Predicated region
    $region42: #{bpnn_forward.1} parent=1 // pred_check
      _
    $region43: #{bpnn_forward.1} parent=1 // pred_check_branch
      %2929 = sbr.rel (0) target = $region45
    $region44: #{bpnn_forward.1} parent=1 // pred_region
      _
    $region45: #{bpnn_forward.1} parent=1 // pred_fallthru
      _
    // Predicated region
    $region46: #{bpnn_forward.1} parent=1 // pred_check
      _
    $region47: #{bpnn_forward.1} parent=1 // pred_check_branch
      %2931 = sbr.rel (0) target = $region49
    $region48: #{bpnn_forward.1} parent=1 // pred_region
      _
    $region49: #{bpnn_forward.1} parent=1 // pred_fallthru
      _
    %2932 = vsyncpa [#allocation3], 1

</llo_original>
